<compile_context>
chip_gen: v5e
topology: v5e:2x2
jax: 0.10.0
libtpu: 0.0.40
codegen_flags: <defaults>
</compile_context>

<pallas_src>
import jax
import jax.numpy as jnp
from jax import lax
from jax.experimental import pallas as pl
from jax.experimental.pallas import tpu as pltpu


# ------------------------------ fused kernel ---------------------------------
def seq2seq_kernel(tf_ref, src_ref, tgt_ref,
                   enc_wx_ref, enc_wh_ref, enc_b_ref,
                   dec_wx_ref, dec_wh_ref, dec_wctx_ref, dec_b_ref,
                   wo_ref, bo_ref,
                   out_ref, ctxh_ref, ctxc_ref):
    """Encoder LSTM over source, then decoder LSTMCell(+context) + Linear over target time.

    tf_ref    : (T,)      int32 in SMEM — per-step teacher-forcing decisions (tf[0] unused).
    src_ref   : (S, B, D) time-major source, VMEM-resident.
    tgt_ref   : (T, B, O) time-major target, VMEM-resident.
    enc_wx/wh : (D,4H) / (H,4H) encoder gate weights (two-dot split, no per-step concat).
    dec_wx/wh : (O,4H) / (H,4H) decoder gate weights (input rows / hidden rows).
    dec_wctx  : (H,4H)   decoder gate weight rows multiplying the (constant) context.
    out_ref   : (T, B, O) resident output block; row 0 stays zero (as in the PyTorch module).
    """
    S = src_ref.shape[0]
    T = tgt_ref.shape[0]
    B = src_ref.shape[1]
    H = ctxh_ref.shape[-1]

    def lstm_step(x, h, c, wx, wh, bias):
        # Two small MXU pushes (x and h) replace the lane-misaligned [x|h] concat.
        gates = (jnp.dot(x, wx, preferred_element_type=jnp.float32)
                 + jnp.dot(h, wh, preferred_element_type=jnp.float32)
                 + bias)                                            # (B, 4H)
        # 3 EUP pushes total: sigmoid/tanh over the full 4H lanes + tanh(c_new).
        sig = jax.nn.sigmoid(gates)
        tnh = jnp.tanh(gates)
        i_g = sig[:, 0 * H:1 * H]                                   # gate order i,f,g,o (PyTorch)
        f_g = sig[:, 1 * H:2 * H]
        g_g = tnh[:, 2 * H:3 * H]
        o_g = sig[:, 3 * H:4 * H]
        c_new = f_g * c + i_g * g_g
        h_new = o_g * jnp.tanh(c_new)
        return h_new, c_new

    # ------------------------------ encoder ----------------------------------
    enc_wx = enc_wx_ref[...]
    enc_wh = enc_wh_ref[...]
    enc_b = jnp.broadcast_to(enc_b_ref[...], (B, 4 * H))            # broadcast hoisted

    def enc_body(t, carry):
        h, c = carry
        return lstm_step(src_ref[t], h, c, enc_wx, enc_wh, enc_b)

    zeros_bh = jnp.zeros((B, H), jnp.float32)
    ctx_h, ctx_c = lax.fori_loop(0, S, enc_body, (zeros_bh, zeros_bh), unroll=True)

    ctxh_ref[...] = ctx_h
    ctxc_ref[...] = ctx_c

    # ------------------------------ decoder ----------------------------------
    # Context contribution to the gates is constant across steps: compute once, fold into bias.
    dec_wx = dec_wx_ref[...]
    dec_wh = dec_wh_ref[...]
    dec_bias = (jnp.dot(ctx_h, dec_wctx_ref[...], preferred_element_type=jnp.float32)
                + dec_b_ref[...])                                   # (B, 4H), bias included
    wo = wo_ref[...]
    O = wo.shape[-1]
    bo = jnp.broadcast_to(bo_ref[...], (B, O))                      # hoisted

    # outputs[0] stays zero; zero ONLY row 0 (rows 1..T-1 are overwritten below).
    out_ref[0] = jnp.zeros((B, O), jnp.float32)

    def dec_body(i, carry):
        inp, h, c = carry
        h_new, c_new = lstm_step(inp, h, c, dec_wx, dec_wh, dec_bias)
        out = jnp.dot(h_new, wo, preferred_element_type=jnp.float32) + bo
        out_ref[i] = out                                            # VMEM store; HBM writeback once at end
        # teacher forcing: single vsel with a scalar SMEM predicate
        inp_next = jnp.where(tf_ref[i] > 0, tgt_ref[i], out)
        return inp_next, h_new, c_new

    lax.fori_loop(1, T, dec_body, (tgt_ref[0], ctx_h, ctx_c), unroll=True)


# ------------------------------ host wrapper ---------------------------------
def seq2seq_forward(source, target, params, teacher_force):
    """Mirrors Seq2Seq.forward.

    source        : (B, S, D_in)
    target        : (B, T, O)
    teacher_force : (T,) int32 — per-step teacher-forcing decisions (index 0 unused).
    Returns (outputs (T, B, O), context_hidden (B, H), context_cell (B, H)).
    """
    B, S, D = source.shape
    _, T, O = target.shape
    H = params["enc"]["wh"].shape[0]

    # One-time (tiny) staging: time-major so the kernel recurrence indexes the outer dim.
    src_tm = jnp.transpose(source, (1, 0, 2))                       # (S, B, D)
    tgt_tm = jnp.transpose(target, (1, 0, 2))                       # (T, B, O)

    # Split the decoder input-weight rows: [0:O] multiply the step input, [O:] the constant context.
    dec_wx_full = params["dec"]["wx"]                               # (O+H, 4H)
    dec_wx_in = dec_wx_full[:O]                                     # (O, 4H)
    dec_wctx = dec_wx_full[O:]                                      # (H, 4H)

    flops = int(S * (2 * B * D * 4 * H + 2 * B * H * 4 * H)
                + 2 * B * H * 4 * H
                + (T - 1) * (2 * B * O * 4 * H + 2 * B * H * 4 * H + 2 * B * H * O))
    transcendentals = int((S + T - 1) * B * 9 * H)
    bytes_accessed = int(4 * (T + src_tm.size + tgt_tm.size
                              + params["enc"]["wx"].size + params["enc"]["wh"].size
                              + params["enc"]["b"].size
                              + dec_wx_in.size + params["dec"]["wh"].size + dec_wctx.size
                              + params["dec"]["b"].size + params["dec"]["wo"].size
                              + params["dec"]["bo"].size + T * B * O + 2 * B * H))

    vmem = pl.BlockSpec(memory_space=pltpu.MemorySpace.VMEM)
    outputs, ctx_h, ctx_c = pl.pallas_call(
        seq2seq_kernel,
        out_shape=(
            jax.ShapeDtypeStruct((T, B, O), jnp.float32),
            jax.ShapeDtypeStruct((B, H), jnp.float32),
            jax.ShapeDtypeStruct((B, H), jnp.float32),
        ),
        in_specs=[
            pl.BlockSpec(memory_space=pltpu.MemorySpace.SMEM),       # teacher-forcing scalars
            vmem, vmem,                                              # source, target (time-major)
            vmem, vmem, vmem,                                        # encoder Wx, Wh, bias
            vmem, vmem, vmem, vmem,                                  # decoder Wx_in, Wh, W_ctx, bias
            vmem, vmem,                                              # output projection W, bias
        ],
        out_specs=(vmem, vmem, vmem),
        cost_estimate=pl.CostEstimate(
            flops=flops, transcendentals=transcendentals, bytes_accessed=bytes_accessed),
        compiler_params=pltpu.CompilerParams(vmem_limit_bytes=32 * 1024 * 1024),
    )(teacher_force, src_tm, tgt_tm,
      params["enc"]["wx"], params["enc"]["wh"], params["enc"]["b"],
      dec_wx_in, params["dec"]["wh"], dec_wctx, params["dec"]["b"],
      params["dec"]["wo"], params["dec"]["bo"])
    return outputs, ctx_h, ctx_c


# --------------------------- pure-JAX reference ------------------------------
def reference_forward(source, target, params, teacher_force):
    """Unfused reference mirroring the PyTorch module, for correctness checking."""
    B, S, D = source.shape
    _, T, O = target.shape
    H = params["enc"]["wh"].shape[0]

    def cell(x, h, c, wx, wh, b):
        g = x @ wx + h @ wh + b
        i = jax.nn.sigmoid(g[:, :H])
        f = jax.nn.sigmoid(g[:, H:2 * H])
        gg = jnp.tanh(g[:, 2 * H:3 * H])
        o = jax.nn.sigmoid(g[:, 3 * H:])
        c = f * c + i * gg
        return o * jnp.tanh(c), c

    h = jnp.zeros((B, H), jnp.float32)
    c = jnp.zeros_like(h)
    for t in range(S):
        h, c = cell(source[:, t, :], h, c,
                    params["enc"]["wx"], params["enc"]["wh"], params["enc"]["b"])
    ctx_h, ctx_c = h, c

    outputs = jnp.zeros((T, B, O), jnp.float32)
    inp = target[:, 0, :]
    for i in range(1, T):
        xc = jnp.concatenate([inp, ctx_h], axis=-1)
        h, c = cell(xc, h, c, params["dec"]["wx"], params["dec"]["wh"], params["dec"]["b"])
        out = h @ params["dec"]["wo"] + params["dec"]["bo"]
        outputs = outputs.at[i].set(out)
        inp = jnp.where(teacher_force[i] > 0, target[:, i, :], out)
    return outputs, ctx_h, ctx_c


# ------------------------------ parameter init -------------------------------
def init_params(key, in_dim, hidden, out_dim):
    bound = 1.0 / jnp.sqrt(hidden)
    ks = jax.random.split(key, 8)
    u = lambda k, shape: jax.random.uniform(k, shape, jnp.float32, -bound, bound)
    enc = {
        "wx": u(ks[0], (in_dim, 4 * hidden)),
        "wh": u(ks[1], (hidden, 4 * hidden)),
        "b": u(ks[2], (1, 4 * hidden)),
    }
    dec_in = out_dim + hidden  # decoder input = concat(step_input, context_hidden)
    dec = {
        "wx": u(ks[3], (dec_in, 4 * hidden)),
        "wh": u(ks[4], (hidden, 4 * hidden)),
        "b": u(ks[5], (1, 4 * hidden)),
        "wo": u(ks[6], (hidden, out_dim)),
        "bo": u(ks[7], (1, out_dim)),
    }
    return {"enc": enc, "dec": dec}


if __name__ == "__main__":
    B, SRC_LEN, TGT_LEN = 2, 6, 5
    IN_DIM, HIDDEN, OUT_DIM = 8, 32, 8
    TEACHER_FORCING_RATIO = 0.5

    key = jax.random.PRNGKey(0)
    k_src, k_tgt, k_par, k_tf = jax.random.split(key, 4)
    source = jax.random.normal(k_src, (B, SRC_LEN, IN_DIM), jnp.float32)
    target = jax.random.normal(k_tgt, (B, TGT_LEN, OUT_DIM), jnp.float32)
    params = init_params(k_par, IN_DIM, HIDDEN, OUT_DIM)

    # Per-call stochastic teacher forcing (functional; decision tf[0] is unused, like PyTorch).
    teacher_force = (jax.random.uniform(k_tf, (TGT_LEN,)) < TEACHER_FORCING_RATIO).astype(jnp.int32)

    fwd = jax.jit(seq2seq_forward)
    outputs, ctx_h, ctx_c = fwd(source, target, params, teacher_force)
    jax.block_until_ready((outputs, ctx_h, ctx_c))

    # shape / semantics checks
    assert outputs.shape == (TGT_LEN, B, OUT_DIM)
    assert ctx_h.shape == (B, HIDDEN) and ctx_c.shape == (B, HIDDEN)
    assert bool(jnp.all(outputs[0] == 0.0))  # outputs[0] stays zero, like the PyTorch module

    # numerical check against the unfused pure-JAX reference
    ref_out, ref_h, ref_c = reference_forward(source, target, params, teacher_force)
    assert bool(jnp.allclose(outputs, ref_out, rtol=1e-4, atol=1e-4))
    assert bool(jnp.allclose(ctx_h, ref_h, rtol=1e-4, atol=1e-4))
    assert bool(jnp.allclose(ctx_c, ref_c, rtol=1e-4, atol=1e-4))

    print("KERNEL_OK")
</pallas_src>

<mosaic_0001>
module attributes {stable_mosaic.version = 11 : i64} {
  func.func @seq2seq_kernel(%arg0: memref<5xi32, #tpu.memory_space<smem>>, %arg1: memref<6x2x8xf32, #tpu.memory_space<vmem>>, %arg2: memref<5x2x8xf32, #tpu.memory_space<vmem>>, %arg3: memref<8x128xf32, #tpu.memory_space<vmem>>, %arg4: memref<32x128xf32, #tpu.memory_space<vmem>>, %arg5: memref<1x128xf32, #tpu.memory_space<vmem>>, %arg6: memref<8x128xf32, #tpu.memory_space<vmem>>, %arg7: memref<32x128xf32, #tpu.memory_space<vmem>>, %arg8: memref<32x128xf32, #tpu.memory_space<vmem>>, %arg9: memref<1x128xf32, #tpu.memory_space<vmem>>, %arg10: memref<32x8xf32, #tpu.memory_space<vmem>>, %arg11: memref<1x8xf32, #tpu.memory_space<vmem>>, %arg12: memref<5x2x8xf32, #tpu.memory_space<vmem>>, %arg13: memref<2x32xf32, #tpu.memory_space<vmem>>, %arg14: memref<2x32xf32, #tpu.memory_space<vmem>>) attributes {dimension_semantics = [], scalar_prefetch = 0 : i64, scratch_operands = 0 : i64, tpu.core_type = #tpu.core_type<tc>} {
    %c0 = arith.constant 0 : index
    %c0_0 = arith.constant 0 : index
    %0 = vector.load %arg3[%c0, %c0_0] : memref<8x128xf32, #tpu.memory_space<vmem>>, vector<8x128xf32>
    %c0_1 = arith.constant 0 : index
    %c0_2 = arith.constant 0 : index
    %1 = vector.load %arg4[%c0_1, %c0_2] : memref<32x128xf32, #tpu.memory_space<vmem>>, vector<32x128xf32>
    %c0_3 = arith.constant 0 : index
    %c0_4 = arith.constant 0 : index
    %2 = vector.load %arg5[%c0_3, %c0_4] : memref<1x128xf32, #tpu.memory_space<vmem>>, vector<1x128xf32>
    %3 = vector.shape_cast %2 : vector<1x128xf32> to vector<1x128xf32>
    %4 = vector.broadcast %3 : vector<1x128xf32> to vector<2x128xf32>
    %cst = arith.constant 0.000000e+00 : f32
    %5 = vector.broadcast %cst : f32 to vector<2x32xf32>
    %c0_i32 = arith.constant 0 : i32
    %6 = arith.index_cast %c0_i32 : i32 to index
    %c0_5 = arith.constant 0 : index
    %c0_6 = arith.constant 0 : index
    %7 = vector.load %arg1[%6, %c0_5, %c0_6] : memref<6x2x8xf32, #tpu.memory_space<vmem>>, vector<1x2x8xf32>
    %8 = vector.shape_cast %7 : vector<1x2x8xf32> to vector<2x8xf32>
    %cst_7 = arith.constant dense<0.000000e+00> : vector<2x128xf32>
    %9 = tpu.matmul %8, %0, %cst_7 {dimension_numbers = #tpu.dot_dimension_numbers<[1], [0], [0], [1], [0, 0, 1, 1], [], []>} : vector<2x8xf32>, vector<8x128xf32>, vector<2x128xf32> -> vector<2x128xf32>
    %cst_8 = arith.constant dense<0.000000e+00> : vector<2x128xf32>
    %10 = tpu.matmul %5, %1, %cst_8 {dimension_numbers = #tpu.dot_dimension_numbers<[1], [0], [0], [1], [0, 0, 1, 1], [], []>} : vector<2x32xf32>, vector<32x128xf32>, vector<2x128xf32> -> vector<2x128xf32>
    %11 = arith.addf %9, %10 : vector<2x128xf32>
    %12 = arith.addf %11, %4 : vector<2x128xf32>
    %13 = arith.negf %12 : vector<2x128xf32>
    %14 = math.exp %13 : vector<2x128xf32>
    %cst_9 = arith.constant 1.000000e+00 : f32
    %15 = vector.broadcast %cst_9 : f32 to vector<2x128xf32>
    %16 = arith.addf %15, %14 : vector<2x128xf32>
    %17 = arith.divf %15, %16 : vector<2x128xf32>
    %18 = math.tanh %12 : vector<2x128xf32>
    %19 = vector.extract_strided_slice %17 {offsets = [0, 0], sizes = [2, 32], strides = [1, 1]} : vector<2x128xf32> to vector<2x32xf32>
    %20 = vector.extract_strided_slice %17 {offsets = [0, 32], sizes = [2, 32], strides = [1, 1]} : vector<2x128xf32> to vector<2x32xf32>
    %21 = vector.extract_strided_slice %18 {offsets = [0, 64], sizes = [2, 32], strides = [1, 1]} : vector<2x128xf32> to vector<2x32xf32>
    %22 = vector.extract_strided_slice %17 {offsets = [0, 96], sizes = [2, 32], strides = [1, 1]} : vector<2x128xf32> to vector<2x32xf32>
    %23 = arith.mulf %20, %5 : vector<2x32xf32>
    %24 = arith.mulf %19, %21 : vector<2x32xf32>
    %25 = arith.addf %23, %24 : vector<2x32xf32>
    %26 = math.tanh %25 : vector<2x32xf32>
    %27 = arith.mulf %22, %26 : vector<2x32xf32>
    %c1_i32 = arith.constant 1 : i32
    %28 = arith.index_cast %c1_i32 : i32 to index
    %c0_10 = arith.constant 0 : index
    %c0_11 = arith.constant 0 : index
    %29 = vector.load %arg1[%28, %c0_10, %c0_11] : memref<6x2x8xf32, #tpu.memory_space<vmem>>, vector<1x2x8xf32>
    %30 = vector.shape_cast %29 : vector<1x2x8xf32> to vector<2x8xf32>
    %cst_12 = arith.constant dense<0.000000e+00> : vector<2x128xf32>
    %31 = tpu.matmul %30, %0, %cst_12 {dimension_numbers = #tpu.dot_dimension_numbers<[1], [0], [0], [1], [0, 0, 1, 1], [], []>} : vector<2x8xf32>, vector<8x128xf32>, vector<2x128xf32> -> vector<2x128xf32>
    %cst_13 = arith.constant dense<0.000000e+00> : vector<2x128xf32>
    %32 = tpu.matmul %27, %1, %cst_13 {dimension_numbers = #tpu.dot_dimension_numbers<[1], [0], [0], [1], [0, 0, 1, 1], [], []>} : vector<2x32xf32>, vector<32x128xf32>, vector<2x128xf32> -> vector<2x128xf32>
    %33 = arith.addf %31, %32 : vector<2x128xf32>
    %34 = arith.addf %33, %4 : vector<2x128xf32>
    %35 = arith.negf %34 : vector<2x128xf32>
    %36 = math.exp %35 : vector<2x128xf32>
    %cst_14 = arith.constant 1.000000e+00 : f32
    %37 = vector.broadcast %cst_14 : f32 to vector<2x128xf32>
    %38 = arith.addf %37, %36 : vector<2x128xf32>
    %39 = arith.divf %37, %38 : vector<2x128xf32>
    %40 = math.tanh %34 : vector<2x128xf32>
    %41 = vector.extract_strided_slice %39 {offsets = [0, 0], sizes = [2, 32], strides = [1, 1]} : vector<2x128xf32> to vector<2x32xf32>
    %42 = vector.extract_strided_slice %39 {offsets = [0, 32], sizes = [2, 32], strides = [1, 1]} : vector<2x128xf32> to vector<2x32xf32>
    %43 = vector.extract_strided_slice %40 {offsets = [0, 64], sizes = [2, 32], strides = [1, 1]} : vector<2x128xf32> to vector<2x32xf32>
    %44 = vector.extract_strided_slice %39 {offsets = [0, 96], sizes = [2, 32], strides = [1, 1]} : vector<2x128xf32> to vector<2x32xf32>
    %45 = arith.mulf %42, %25 : vector<2x32xf32>
    %46 = arith.mulf %41, %43 : vector<2x32xf32>
    %47 = arith.addf %45, %46 : vector<2x32xf32>
    %48 = math.tanh %47 : vector<2x32xf32>
    %49 = arith.mulf %44, %48 : vector<2x32xf32>
    %c2_i32 = arith.constant 2 : i32
    %50 = arith.index_cast %c2_i32 : i32 to index
    %c0_15 = arith.constant 0 : index
    %c0_16 = arith.constant 0 : index
    %51 = vector.load %arg1[%50, %c0_15, %c0_16] : memref<6x2x8xf32, #tpu.memory_space<vmem>>, vector<1x2x8xf32>
    %52 = vector.shape_cast %51 : vector<1x2x8xf32> to vector<2x8xf32>
    %cst_17 = arith.constant dense<0.000000e+00> : vector<2x128xf32>
    %53 = tpu.matmul %52, %0, %cst_17 {dimension_numbers = #tpu.dot_dimension_numbers<[1], [0], [0], [1], [0, 0, 1, 1], [], []>} : vector<2x8xf32>, vector<8x128xf32>, vector<2x128xf32> -> vector<2x128xf32>
    %cst_18 = arith.constant dense<0.000000e+00> : vector<2x128xf32>
    %54 = tpu.matmul %49, %1, %cst_18 {dimension_numbers = #tpu.dot_dimension_numbers<[1], [0], [0], [1], [0, 0, 1, 1], [], []>} : vector<2x32xf32>, vector<32x128xf32>, vector<2x128xf32> -> vector<2x128xf32>
    %55 = arith.addf %53, %54 : vector<2x128xf32>
    %56 = arith.addf %55, %4 : vector<2x128xf32>
    %57 = arith.negf %56 : vector<2x128xf32>
    %58 = math.exp %57 : vector<2x128xf32>
    %cst_19 = arith.constant 1.000000e+00 : f32
    %59 = vector.broadcast %cst_19 : f32 to vector<2x128xf32>
    %60 = arith.addf %59, %58 : vector<2x128xf32>
    %61 = arith.divf %59, %60 : vector<2x128xf32>
    %62 = math.tanh %56 : vector<2x128xf32>
    %63 = vector.extract_strided_slice %61 {offsets = [0, 0], sizes = [2, 32], strides = [1, 1]} : vector<2x128xf32> to vector<2x32xf32>
    %64 = vector.extract_strided_slice %61 {offsets = [0, 32], sizes = [2, 32], strides = [1, 1]} : vector<2x128xf32> to vector<2x32xf32>
    %65 = vector.extract_strided_slice %62 {offsets = [0, 64], sizes = [2, 32], strides = [1, 1]} : vector<2x128xf32> to vector<2x32xf32>
    %66 = vector.extract_strided_slice %61 {offsets = [0, 96], sizes = [2, 32], strides = [1, 1]} : vector<2x128xf32> to vector<2x32xf32>
    %67 = arith.mulf %64, %47 : vector<2x32xf32>
    %68 = arith.mulf %63, %65 : vector<2x32xf32>
    %69 = arith.addf %67, %68 : vector<2x32xf32>
    %70 = math.tanh %69 : vector<2x32xf32>
    %71 = arith.mulf %66, %70 : vector<2x32xf32>
    %c3_i32 = arith.constant 3 : i32
    %72 = arith.index_cast %c3_i32 : i32 to index
    %c0_20 = arith.constant 0 : index
    %c0_21 = arith.constant 0 : index
    %73 = vector.load %arg1[%72, %c0_20, %c0_21] : memref<6x2x8xf32, #tpu.memory_space<vmem>>, vector<1x2x8xf32>
    %74 = vector.shape_cast %73 : vector<1x2x8xf32> to vector<2x8xf32>
    %cst_22 = arith.constant dense<0.000000e+00> : vector<2x128xf32>
    %75 = tpu.matmul %74, %0, %cst_22 {dimension_numbers = #tpu.dot_dimension_numbers<[1], [0], [0], [1], [0, 0, 1, 1], [], []>} : vector<2x8xf32>, vector<8x128xf32>, vector<2x128xf32> -> vector<2x128xf32>
    %cst_23 = arith.constant dense<0.000000e+00> : vector<2x128xf32>
    %76 = tpu.matmul %71, %1, %cst_23 {dimension_numbers = #tpu.dot_dimension_numbers<[1], [0], [0], [1], [0, 0, 1, 1], [], []>} : vector<2x32xf32>, vector<32x128xf32>, vector<2x128xf32> -> vector<2x128xf32>
    %77 = arith.addf %75, %76 : vector<2x128xf32>
    %78 = arith.addf %77, %4 : vector<2x128xf32>
    %79 = arith.negf %78 : vector<2x128xf32>
    %80 = math.exp %79 : vector<2x128xf32>
    %cst_24 = arith.constant 1.000000e+00 : f32
    %81 = vector.broadcast %cst_24 : f32 to vector<2x128xf32>
    %82 = arith.addf %81, %80 : vector<2x128xf32>
    %83 = arith.divf %81, %82 : vector<2x128xf32>
    %84 = math.tanh %78 : vector<2x128xf32>
    %85 = vector.extract_strided_slice %83 {offsets = [0, 0], sizes = [2, 32], strides = [1, 1]} : vector<2x128xf32> to vector<2x32xf32>
    %86 = vector.extract_strided_slice %83 {offsets = [0, 32], sizes = [2, 32], strides = [1, 1]} : vector<2x128xf32> to vector<2x32xf32>
    %87 = vector.extract_strided_slice %84 {offsets = [0, 64], sizes = [2, 32], strides = [1, 1]} : vector<2x128xf32> to vector<2x32xf32>
    %88 = vector.extract_strided_slice %83 {offsets = [0, 96], sizes = [2, 32], strides = [1, 1]} : vector<2x128xf32> to vector<2x32xf32>
    %89 = arith.mulf %86, %69 : vector<2x32xf32>
    %90 = arith.mulf %85, %87 : vector<2x32xf32>
    %91 = arith.addf %89, %90 : vector<2x32xf32>
    %92 = math.tanh %91 : vector<2x32xf32>
    %93 = arith.mulf %88, %92 : vector<2x32xf32>
    %c4_i32 = arith.constant 4 : i32
    %94 = arith.index_cast %c4_i32 : i32 to index
    %c0_25 = arith.constant 0 : index
    %c0_26 = arith.constant 0 : index
    %95 = vector.load %arg1[%94, %c0_25, %c0_26] : memref<6x2x8xf32, #tpu.memory_space<vmem>>, vector<1x2x8xf32>
    %96 = vector.shape_cast %95 : vector<1x2x8xf32> to vector<2x8xf32>
    %cst_27 = arith.constant dense<0.000000e+00> : vector<2x128xf32>
    %97 = tpu.matmul %96, %0, %cst_27 {dimension_numbers = #tpu.dot_dimension_numbers<[1], [0], [0], [1], [0, 0, 1, 1], [], []>} : vector<2x8xf32>, vector<8x128xf32>, vector<2x128xf32> -> vector<2x128xf32>
    %cst_28 = arith.constant dense<0.000000e+00> : vector<2x128xf32>
    %98 = tpu.matmul %93, %1, %cst_28 {dimension_numbers = #tpu.dot_dimension_numbers<[1], [0], [0], [1], [0, 0, 1, 1], [], []>} : vector<2x32xf32>, vector<32x128xf32>, vector<2x128xf32> -> vector<2x128xf32>
    %99 = arith.addf %97, %98 : vector<2x128xf32>
    %100 = arith.addf %99, %4 : vector<2x128xf32>
    %101 = arith.negf %100 : vector<2x128xf32>
    %102 = math.exp %101 : vector<2x128xf32>
    %cst_29 = arith.constant 1.000000e+00 : f32
    %103 = vector.broadcast %cst_29 : f32 to vector<2x128xf32>
    %104 = arith.addf %103, %102 : vector<2x128xf32>
    %105 = arith.divf %103, %104 : vector<2x128xf32>
    %106 = math.tanh %100 : vector<2x128xf32>
    %107 = vector.extract_strided_slice %105 {offsets = [0, 0], sizes = [2, 32], strides = [1, 1]} : vector<2x128xf32> to vector<2x32xf32>
    %108 = vector.extract_strided_slice %105 {offsets = [0, 32], sizes = [2, 32], strides = [1, 1]} : vector<2x128xf32> to vector<2x32xf32>
    %109 = vector.extract_strided_slice %106 {offsets = [0, 64], sizes = [2, 32], strides = [1, 1]} : vector<2x128xf32> to vector<2x32xf32>
    %110 = vector.extract_strided_slice %105 {offsets = [0, 96], sizes = [2, 32], strides = [1, 1]} : vector<2x128xf32> to vector<2x32xf32>
    %111 = arith.mulf %108, %91 : vector<2x32xf32>
    %112 = arith.mulf %107, %109 : vector<2x32xf32>
    %113 = arith.addf %111, %112 : vector<2x32xf32>
    %114 = math.tanh %113 : vector<2x32xf32>
    %115 = arith.mulf %110, %114 : vector<2x32xf32>
    %c5_i32 = arith.constant 5 : i32
    %116 = arith.index_cast %c5_i32 : i32 to index
    %c0_30 = arith.constant 0 : index
    %c0_31 = arith.constant 0 : index
    %117 = vector.load %arg1[%116, %c0_30, %c0_31] : memref<6x2x8xf32, #tpu.memory_space<vmem>>, vector<1x2x8xf32>
    %118 = vector.shape_cast %117 : vector<1x2x8xf32> to vector<2x8xf32>
    %cst_32 = arith.constant dense<0.000000e+00> : vector<2x128xf32>
    %119 = tpu.matmul %118, %0, %cst_32 {dimension_numbers = #tpu.dot_dimension_numbers<[1], [0], [0], [1], [0, 0, 1, 1], [], []>} : vector<2x8xf32>, vector<8x128xf32>, vector<2x128xf32> -> vector<2x128xf32>
    %cst_33 = arith.constant dense<0.000000e+00> : vector<2x128xf32>
    %120 = tpu.matmul %115, %1, %cst_33 {dimension_numbers = #tpu.dot_dimension_numbers<[1], [0], [0], [1], [0, 0, 1, 1], [], []>} : vector<2x32xf32>, vector<32x128xf32>, vector<2x128xf32> -> vector<2x128xf32>
    %121 = arith.addf %119, %120 : vector<2x128xf32>
    %122 = arith.addf %121, %4 : vector<2x128xf32>
    %123 = arith.negf %122 : vector<2x128xf32>
    %124 = math.exp %123 : vector<2x128xf32>
    %cst_34 = arith.constant 1.000000e+00 : f32
    %125 = vector.broadcast %cst_34 : f32 to vector<2x128xf32>
    %126 = arith.addf %125, %124 : vector<2x128xf32>
    %127 = arith.divf %125, %126 : vector<2x128xf32>
    %128 = math.tanh %122 : vector<2x128xf32>
    %129 = vector.extract_strided_slice %127 {offsets = [0, 0], sizes = [2, 32], strides = [1, 1]} : vector<2x128xf32> to vector<2x32xf32>
    %130 = vector.extract_strided_slice %127 {offsets = [0, 32], sizes = [2, 32], strides = [1, 1]} : vector<2x128xf32> to vector<2x32xf32>
    %131 = vector.extract_strided_slice %128 {offsets = [0, 64], sizes = [2, 32], strides = [1, 1]} : vector<2x128xf32> to vector<2x32xf32>
    %132 = vector.extract_strided_slice %127 {offsets = [0, 96], sizes = [2, 32], strides = [1, 1]} : vector<2x128xf32> to vector<2x32xf32>
    %133 = arith.mulf %130, %113 : vector<2x32xf32>
    %134 = arith.mulf %129, %131 : vector<2x32xf32>
    %135 = arith.addf %133, %134 : vector<2x32xf32>
    %136 = math.tanh %135 : vector<2x32xf32>
    %137 = arith.mulf %132, %136 : vector<2x32xf32>
    %c6_i32 = arith.constant 6 : i32
    %c0_35 = arith.constant 0 : index
    %c0_36 = arith.constant 0 : index
    %138 = vector.load %arg13[%c0_35, %c0_36] : memref<2x32xf32, #tpu.memory_space<vmem>>, vector<2x32xf32>
    tpu.vector_store %arg13[%c0_35, %c0_36], %137 {strides = array<i32>} : memref<2x32xf32, #tpu.memory_space<vmem>>, vector<2x32xf32>,
    %c0_37 = arith.constant 0 : index
    %c0_38 = arith.constant 0 : index
    %139 = vector.load %arg14[%c0_37, %c0_38] : memref<2x32xf32, #tpu.memory_space<vmem>>, vector<2x32xf32>
    tpu.vector_store %arg14[%c0_37, %c0_38], %135 {strides = array<i32>} : memref<2x32xf32, #tpu.memory_space<vmem>>, vector<2x32xf32>,
    %c0_39 = arith.constant 0 : index
    %c0_40 = arith.constant 0 : index
    %140 = vector.load %arg6[%c0_39, %c0_40] : memref<8x128xf32, #tpu.memory_space<vmem>>, vector<8x128xf32>
    %c0_41 = arith.constant 0 : index
    %c0_42 = arith.constant 0 : index
    %141 = vector.load %arg7[%c0_41, %c0_42] : memref<32x128xf32, #tpu.memory_space<vmem>>, vector<32x128xf32>
    %c0_43 = arith.constant 0 : index
    %c0_44 = arith.constant 0 : index
    %142 = vector.load %arg8[%c0_43, %c0_44] : memref<32x128xf32, #tpu.memory_space<vmem>>, vector<32x128xf32>
    %cst_45 = arith.constant dense<0.000000e+00> : vector<2x128xf32>
    %143 = tpu.matmul %137, %142, %cst_45 {dimension_numbers = #tpu.dot_dimension_numbers<[1], [0], [0], [1], [0, 0, 1, 1], [], []>} : vector<2x32xf32>, vector<32x128xf32>, vector<2x128xf32> -> vector<2x128xf32>
    %c0_46 = arith.constant 0 : index
    %c0_47 = arith.constant 0 : index
    %144 = vector.load %arg9[%c0_46, %c0_47] : memref<1x128xf32, #tpu.memory_space<vmem>>, vector<1x128xf32>
    %145 = vector.broadcast %144 : vector<1x128xf32> to vector<2x128xf32>
    %146 = arith.addf %143, %145 : vector<2x128xf32>
    %c0_48 = arith.constant 0 : index
    %c0_49 = arith.constant 0 : index
    %147 = vector.load %arg10[%c0_48, %c0_49] : memref<32x8xf32, #tpu.memory_space<vmem>>, vector<32x8xf32>
    %c0_50 = arith.constant 0 : index
    %c0_51 = arith.constant 0 : index
    %148 = vector.load %arg11[%c0_50, %c0_51] : memref<1x8xf32, #tpu.memory_space<vmem>>, vector<1x8xf32>
    %149 = vector.shape_cast %148 : vector<1x8xf32> to vector<1x8xf32>
    %150 = vector.broadcast %149 : vector<1x8xf32> to vector<2x8xf32>
    %cst_52 = arith.constant 0.000000e+00 : f32
    %151 = vector.broadcast %cst_52 : f32 to vector<2x8xf32>
    %c0_53 = arith.constant 0 : index
    %c0_54 = arith.constant 0 : index
    %c0_55 = arith.constant 0 : index
    %152 = vector.load %arg12[%c0_53, %c0_54, %c0_55] : memref<5x2x8xf32, #tpu.memory_space<vmem>>, vector<1x2x8xf32>
    %153 = vector.shape_cast %152 : vector<1x2x8xf32> to vector<2x8xf32>
    %154 = vector.shape_cast %151 : vector<2x8xf32> to vector<1x2x8xf32>
    tpu.vector_store %arg12[%c0_53, %c0_54, %c0_55], %154 {strides = array<i32>} : memref<5x2x8xf32, #tpu.memory_space<vmem>>, vector<1x2x8xf32>,
    %c0_56 = arith.constant 0 : index
    %c0_57 = arith.constant 0 : index
    %c0_58 = arith.constant 0 : index
    %155 = vector.load %arg2[%c0_56, %c0_57, %c0_58] : memref<5x2x8xf32, #tpu.memory_space<vmem>>, vector<1x2x8xf32>
    %156 = vector.shape_cast %155 : vector<1x2x8xf32> to vector<2x8xf32>
    %c1_i32_59 = arith.constant 1 : i32
    %cst_60 = arith.constant dense<0.000000e+00> : vector<2x128xf32>
    %157 = tpu.matmul %156, %140, %cst_60 {dimension_numbers = #tpu.dot_dimension_numbers<[1], [0], [0], [1], [0, 0, 1, 1], [], []>} : vector<2x8xf32>, vector<8x128xf32>, vector<2x128xf32> -> vector<2x128xf32>
    %cst_61 = arith.constant dense<0.000000e+00> : vector<2x128xf32>
    %158 = tpu.matmul %137, %141, %cst_61 {dimension_numbers = #tpu.dot_dimension_numbers<[1], [0], [0], [1], [0, 0, 1, 1], [], []>} : vector<2x32xf32>, vector<32x128xf32>, vector<2x128xf32> -> vector<2x128xf32>
    %159 = arith.addf %157, %158 : vector<2x128xf32>
    %160 = arith.addf %159, %146 : vector<2x128xf32>
    %161 = arith.negf %160 : vector<2x128xf32>
    %162 = math.exp %161 : vector<2x128xf32>
    %cst_62 = arith.constant 1.000000e+00 : f32
    %163 = vector.broadcast %cst_62 : f32 to vector<2x128xf32>
    %164 = arith.addf %163, %162 : vector<2x128xf32>
    %165 = arith.divf %163, %164 : vector<2x128xf32>
    %166 = math.tanh %160 : vector<2x128xf32>
    %167 = vector.extract_strided_slice %165 {offsets = [0, 0], sizes = [2, 32], strides = [1, 1]} : vector<2x128xf32> to vector<2x32xf32>
    %168 = vector.extract_strided_slice %165 {offsets = [0, 32], sizes = [2, 32], strides = [1, 1]} : vector<2x128xf32> to vector<2x32xf32>
    %169 = vector.extract_strided_slice %166 {offsets = [0, 64], sizes = [2, 32], strides = [1, 1]} : vector<2x128xf32> to vector<2x32xf32>
    %170 = vector.extract_strided_slice %165 {offsets = [0, 96], sizes = [2, 32], strides = [1, 1]} : vector<2x128xf32> to vector<2x32xf32>
    %171 = arith.mulf %168, %135 : vector<2x32xf32>
    %172 = arith.mulf %167, %169 : vector<2x32xf32>
    %173 = arith.addf %171, %172 : vector<2x32xf32>
    %174 = math.tanh %173 : vector<2x32xf32>
    %175 = arith.mulf %170, %174 : vector<2x32xf32>
    %cst_63 = arith.constant dense<0.000000e+00> : vector<2x8xf32>
    %176 = tpu.matmul %175, %147, %cst_63 {dimension_numbers = #tpu.dot_dimension_numbers<[1], [0], [0], [1], [0, 0, 1, 1], [], []>} : vector<2x32xf32>, vector<32x8xf32>, vector<2x8xf32> -> vector<2x8xf32>
    %177 = arith.addf %176, %150 : vector<2x8xf32>
    %178 = arith.index_cast %c1_i32_59 : i32 to index
    %c0_64 = arith.constant 0 : index
    %c0_65 = arith.constant 0 : index
    %179 = vector.load %arg12[%178, %c0_64, %c0_65] : memref<5x2x8xf32, #tpu.memory_space<vmem>>, vector<1x2x8xf32>
    %180 = vector.shape_cast %179 : vector<1x2x8xf32> to vector<2x8xf32>
    %181 = vector.shape_cast %177 : vector<2x8xf32> to vector<1x2x8xf32>
    tpu.vector_store %arg12[%178, %c0_64, %c0_65], %181 {strides = array<i32>} : memref<5x2x8xf32, #tpu.memory_space<vmem>>, vector<1x2x8xf32>,
    %182 = arith.index_cast %c1_i32_59 : i32 to index
    %183 = memref.load %arg0[%182] : memref<5xi32, #tpu.memory_space<smem>>
    %c0_i32_66 = arith.constant 0 : i32
    %184 = arith.cmpi sgt, %183, %c0_i32_66 : i32
    %185 = arith.index_cast %c1_i32_59 : i32 to index
    %c0_67 = arith.constant 0 : index
    %c0_68 = arith.constant 0 : index
    %186 = vector.load %arg2[%185, %c0_67, %c0_68] : memref<5x2x8xf32, #tpu.memory_space<vmem>>, vector<1x2x8xf32>
    %187 = vector.shape_cast %186 : vector<1x2x8xf32> to vector<2x8xf32>
    %188 = arith.select %184, %187, %177 : vector<2x8xf32>
    %c2_i32_69 = arith.constant 2 : i32
    %cst_70 = arith.constant dense<0.000000e+00> : vector<2x128xf32>
    %189 = tpu.matmul %188, %140, %cst_70 {dimension_numbers = #tpu.dot_dimension_numbers<[1], [0], [0], [1], [0, 0, 1, 1], [], []>} : vector<2x8xf32>, vector<8x128xf32>, vector<2x128xf32> -> vector<2x128xf32>
    %cst_71 = arith.constant dense<0.000000e+00> : vector<2x128xf32>
    %190 = tpu.matmul %175, %141, %cst_71 {dimension_numbers = #tpu.dot_dimension_numbers<[1], [0], [0], [1], [0, 0, 1, 1], [], []>} : vector<2x32xf32>, vector<32x128xf32>, vector<2x128xf32> -> vector<2x128xf32>
    %191 = arith.addf %189, %190 : vector<2x128xf32>
    %192 = arith.addf %191, %146 : vector<2x128xf32>
    %193 = arith.negf %192 : vector<2x128xf32>
    %194 = math.exp %193 : vector<2x128xf32>
    %cst_72 = arith.constant 1.000000e+00 : f32
    %195 = vector.broadcast %cst_72 : f32 to vector<2x128xf32>
    %196 = arith.addf %195, %194 : vector<2x128xf32>
    %197 = arith.divf %195, %196 : vector<2x128xf32>
    %198 = math.tanh %192 : vector<2x128xf32>
    %199 = vector.extract_strided_slice %197 {offsets = [0, 0], sizes = [2, 32], strides = [1, 1]} : vector<2x128xf32> to vector<2x32xf32>
    %200 = vector.extract_strided_slice %197 {offsets = [0, 32], sizes = [2, 32], strides = [1, 1]} : vector<2x128xf32> to vector<2x32xf32>
    %201 = vector.extract_strided_slice %198 {offsets = [0, 64], sizes = [2, 32], strides = [1, 1]} : vector<2x128xf32> to vector<2x32xf32>
    %202 = vector.extract_strided_slice %197 {offsets = [0, 96], sizes = [2, 32], strides = [1, 1]} : vector<2x128xf32> to vector<2x32xf32>
    %203 = arith.mulf %200, %173 : vector<2x32xf32>
    %204 = arith.mulf %199, %201 : vector<2x32xf32>
    %205 = arith.addf %203, %204 : vector<2x32xf32>
    %206 = math.tanh %205 : vector<2x32xf32>
    %207 = arith.mulf %202, %206 : vector<2x32xf32>
    %cst_73 = arith.constant dense<0.000000e+00> : vector<2x8xf32>
    %208 = tpu.matmul %207, %147, %cst_73 {dimension_numbers = #tpu.dot_dimension_numbers<[1], [0], [0], [1], [0, 0, 1, 1], [], []>} : vector<2x32xf32>, vector<32x8xf32>, vector<2x8xf32> -> vector<2x8xf32>
    %209 = arith.addf %208, %150 : vector<2x8xf32>
    %210 = arith.index_cast %c2_i32_69 : i32 to index
    %c0_74 = arith.constant 0 : index
    %c0_75 = arith.constant 0 : index
    %211 = vector.load %arg12[%210, %c0_74, %c0_75] : memref<5x2x8xf32, #tpu.memory_space<vmem>>, vector<1x2x8xf32>
    %212 = vector.shape_cast %211 : vector<1x2x8xf32> to vector<2x8xf32>
    %213 = vector.shape_cast %209 : vector<2x8xf32> to vector<1x2x8xf32>
    tpu.vector_store %arg12[%210, %c0_74, %c0_75], %213 {strides = array<i32>} : memref<5x2x8xf32, #tpu.memory_space<vmem>>, vector<1x2x8xf32>,
    %214 = arith.index_cast %c2_i32_69 : i32 to index
    %215 = memref.load %arg0[%214] : memref<5xi32, #tpu.memory_space<smem>>
    %c0_i32_76 = arith.constant 0 : i32
    %216 = arith.cmpi sgt, %215, %c0_i32_76 : i32
    %217 = arith.index_cast %c2_i32_69 : i32 to index
    %c0_77 = arith.constant 0 : index
    %c0_78 = arith.constant 0 : index
    %218 = vector.load %arg2[%217, %c0_77, %c0_78] : memref<5x2x8xf32, #tpu.memory_space<vmem>>, vector<1x2x8xf32>
    %219 = vector.shape_cast %218 : vector<1x2x8xf32> to vector<2x8xf32>
    %220 = arith.select %216, %219, %209 : vector<2x8xf32>
    %c3_i32_79 = arith.constant 3 : i32
    %cst_80 = arith.constant dense<0.000000e+00> : vector<2x128xf32>
    %221 = tpu.matmul %220, %140, %cst_80 {dimension_numbers = #tpu.dot_dimension_numbers<[1], [0], [0], [1], [0, 0, 1, 1], [], []>} : vector<2x8xf32>, vector<8x128xf32>, vector<2x128xf32> -> vector<2x128xf32>
    %cst_81 = arith.constant dense<0.000000e+00> : vector<2x128xf32>
    %222 = tpu.matmul %207, %141, %cst_81 {dimension_numbers = #tpu.dot_dimension_numbers<[1], [0], [0], [1], [0, 0, 1, 1], [], []>} : vector<2x32xf32>, vector<32x128xf32>, vector<2x128xf32> -> vector<2x128xf32>
    %223 = arith.addf %221, %222 : vector<2x128xf32>
    %224 = arith.addf %223, %146 : vector<2x128xf32>
    %225 = arith.negf %224 : vector<2x128xf32>
    %226 = math.exp %225 : vector<2x128xf32>
    %cst_82 = arith.constant 1.000000e+00 : f32
    %227 = vector.broadcast %cst_82 : f32 to vector<2x128xf32>
    %228 = arith.addf %227, %226 : vector<2x128xf32>
    %229 = arith.divf %227, %228 : vector<2x128xf32>
    %230 = math.tanh %224 : vector<2x128xf32>
    %231 = vector.extract_strided_slice %229 {offsets = [0, 0], sizes = [2, 32], strides = [1, 1]} : vector<2x128xf32> to vector<2x32xf32>
    %232 = vector.extract_strided_slice %229 {offsets = [0, 32], sizes = [2, 32], strides = [1, 1]} : vector<2x128xf32> to vector<2x32xf32>
    %233 = vector.extract_strided_slice %230 {offsets = [0, 64], sizes = [2, 32], strides = [1, 1]} : vector<2x128xf32> to vector<2x32xf32>
    %234 = vector.extract_strided_slice %229 {offsets = [0, 96], sizes = [2, 32], strides = [1, 1]} : vector<2x128xf32> to vector<2x32xf32>
    %235 = arith.mulf %232, %205 : vector<2x32xf32>
    %236 = arith.mulf %231, %233 : vector<2x32xf32>
    %237 = arith.addf %235, %236 : vector<2x32xf32>
    %238 = math.tanh %237 : vector<2x32xf32>
    %239 = arith.mulf %234, %238 : vector<2x32xf32>
    %cst_83 = arith.constant dense<0.000000e+00> : vector<2x8xf32>
    %240 = tpu.matmul %239, %147, %cst_83 {dimension_numbers = #tpu.dot_dimension_numbers<[1], [0], [0], [1], [0, 0, 1, 1], [], []>} : vector<2x32xf32>, vector<32x8xf32>, vector<2x8xf32> -> vector<2x8xf32>
    %241 = arith.addf %240, %150 : vector<2x8xf32>
    %242 = arith.index_cast %c3_i32_79 : i32 to index
    %c0_84 = arith.constant 0 : index
    %c0_85 = arith.constant 0 : index
    %243 = vector.load %arg12[%242, %c0_84, %c0_85] : memref<5x2x8xf32, #tpu.memory_space<vmem>>, vector<1x2x8xf32>
    %244 = vector.shape_cast %243 : vector<1x2x8xf32> to vector<2x8xf32>
    %245 = vector.shape_cast %241 : vector<2x8xf32> to vector<1x2x8xf32>
    tpu.vector_store %arg12[%242, %c0_84, %c0_85], %245 {strides = array<i32>} : memref<5x2x8xf32, #tpu.memory_space<vmem>>, vector<1x2x8xf32>,
    %246 = arith.index_cast %c3_i32_79 : i32 to index
    %247 = memref.load %arg0[%246] : memref<5xi32, #tpu.memory_space<smem>>
    %c0_i32_86 = arith.constant 0 : i32
    %248 = arith.cmpi sgt, %247, %c0_i32_86 : i32
    %249 = arith.index_cast %c3_i32_79 : i32 to index
    %c0_87 = arith.constant 0 : index
    %c0_88 = arith.constant 0 : index
    %250 = vector.load %arg2[%249, %c0_87, %c0_88] : memref<5x2x8xf32, #tpu.memory_space<vmem>>, vector<1x2x8xf32>
    %251 = vector.shape_cast %250 : vector<1x2x8xf32> to vector<2x8xf32>
    %252 = arith.select %248, %251, %241 : vector<2x8xf32>
    %c4_i32_89 = arith.constant 4 : i32
    %cst_90 = arith.constant dense<0.000000e+00> : vector<2x128xf32>
    %253 = tpu.matmul %252, %140, %cst_90 {dimension_numbers = #tpu.dot_dimension_numbers<[1], [0], [0], [1], [0, 0, 1, 1], [], []>} : vector<2x8xf32>, vector<8x128xf32>, vector<2x128xf32> -> vector<2x128xf32>
    %cst_91 = arith.constant dense<0.000000e+00> : vector<2x128xf32>
    %254 = tpu.matmul %239, %141, %cst_91 {dimension_numbers = #tpu.dot_dimension_numbers<[1], [0], [0], [1], [0, 0, 1, 1], [], []>} : vector<2x32xf32>, vector<32x128xf32>, vector<2x128xf32> -> vector<2x128xf32>
    %255 = arith.addf %253, %254 : vector<2x128xf32>
    %256 = arith.addf %255, %146 : vector<2x128xf32>
    %257 = arith.negf %256 : vector<2x128xf32>
    %258 = math.exp %257 : vector<2x128xf32>
    %cst_92 = arith.constant 1.000000e+00 : f32
    %259 = vector.broadcast %cst_92 : f32 to vector<2x128xf32>
    %260 = arith.addf %259, %258 : vector<2x128xf32>
    %261 = arith.divf %259, %260 : vector<2x128xf32>
    %262 = math.tanh %256 : vector<2x128xf32>
    %263 = vector.extract_strided_slice %261 {offsets = [0, 0], sizes = [2, 32], strides = [1, 1]} : vector<2x128xf32> to vector<2x32xf32>
    %264 = vector.extract_strided_slice %261 {offsets = [0, 32], sizes = [2, 32], strides = [1, 1]} : vector<2x128xf32> to vector<2x32xf32>
    %265 = vector.extract_strided_slice %262 {offsets = [0, 64], sizes = [2, 32], strides = [1, 1]} : vector<2x128xf32> to vector<2x32xf32>
    %266 = vector.extract_strided_slice %261 {offsets = [0, 96], sizes = [2, 32], strides = [1, 1]} : vector<2x128xf32> to vector<2x32xf32>
    %267 = arith.mulf %264, %237 : vector<2x32xf32>
    %268 = arith.mulf %263, %265 : vector<2x32xf32>
    %269 = arith.addf %267, %268 : vector<2x32xf32>
    %270 = math.tanh %269 : vector<2x32xf32>
    %271 = arith.mulf %266, %270 : vector<2x32xf32>
    %cst_93 = arith.constant dense<0.000000e+00> : vector<2x8xf32>
    %272 = tpu.matmul %271, %147, %cst_93 {dimension_numbers = #tpu.dot_dimension_numbers<[1], [0], [0], [1], [0, 0, 1, 1], [], []>} : vector<2x32xf32>, vector<32x8xf32>, vector<2x8xf32> -> vector<2x8xf32>
    %273 = arith.addf %272, %150 : vector<2x8xf32>
    %274 = arith.index_cast %c4_i32_89 : i32 to index
    %c0_94 = arith.constant 0 : index
    %c0_95 = arith.constant 0 : index
    %275 = vector.load %arg12[%274, %c0_94, %c0_95] : memref<5x2x8xf32, #tpu.memory_space<vmem>>, vector<1x2x8xf32>
    %276 = vector.shape_cast %275 : vector<1x2x8xf32> to vector<2x8xf32>
    %277 = vector.shape_cast %273 : vector<2x8xf32> to vector<1x2x8xf32>
    tpu.vector_store %arg12[%274, %c0_94, %c0_95], %277 {strides = array<i32>} : memref<5x2x8xf32, #tpu.memory_space<vmem>>, vector<1x2x8xf32>,
    %278 = arith.index_cast %c4_i32_89 : i32 to index
    %279 = memref.load %arg0[%278] : memref<5xi32, #tpu.memory_space<smem>>
    %c0_i32_96 = arith.constant 0 : i32
    %280 = arith.cmpi sgt, %279, %c0_i32_96 : i32
    %281 = arith.index_cast %c4_i32_89 : i32 to index
    %c0_97 = arith.constant 0 : index
    %c0_98 = arith.constant 0 : index
    %282 = vector.load %arg2[%281, %c0_97, %c0_98] : memref<5x2x8xf32, #tpu.memory_space<vmem>>, vector<1x2x8xf32>
    %283 = vector.shape_cast %282 : vector<1x2x8xf32> to vector<2x8xf32>
    %284 = arith.select %280, %283, %273 : vector<2x8xf32>
    %c4_i32_99 = arith.constant 4 : i32
    return
  }
}

</mosaic_0001>

<llo_original>
// kernel: seq2seq_forward.1
$region0: #{seq2seq_forward.1}
  #allocation0 [shape = 'u32[]', space=smem, size = 0x4, offset = 0x4, fixed_abs, tag = 'smem constant byte address 0x4 - core index']
  #allocation1 [shape = 'u32[72,128]{1,0:T(1,128)}', space=vmem, size = 0x9000, scoped, tag = 'internal scratch']
  %s0 = inlined_call_operand.vmem [shape: s32[5], index: 0, kind: input, shape index: {}]
  %s1 = inlined_call_operand.vmem [shape: f32[6,2,8], index: 1, kind: input, shape index: {}]
  %s2 = inlined_call_operand.hbm [shape: f32[5,2,8], index: 2, kind: input, shape index: {}]
  %s3 = inlined_call_operand.hbm [shape: f32[8,128], index: 3, kind: input, shape index: {}]
  %s4 = inlined_call_operand.vmem [shape: f32[32,128], index: 4, kind: input, shape index: {}]
  %s5 = inlined_call_operand.vmem [shape: f32[1,128], index: 5, kind: input, shape index: {}]
  %s6 = inlined_call_operand.vmem [shape: f32[8,128], index: 6, kind: input, shape index: {}]
  %s7 = inlined_call_operand.vmem [shape: f32[32,128], index: 7, kind: input, shape index: {}]
  %s8 = inlined_call_operand.vmem [shape: f32[32,128], index: 8, kind: input, shape index: {}]
  %s9 = inlined_call_operand.hbm [shape: f32[1,128], index: 9, kind: input, shape index: {}]
  %s10 = inlined_call_operand.vmem [shape: f32[32,8], index: 10, kind: input, shape index: {}]
  %s11 = inlined_call_operand.hbm [shape: f32[1,8], index: 11, kind: input, shape index: {}]
  %s12 = inlined_call_operand.hbm [shape: f32[5,2,8], index: 12, kind: output, shape index: {0}]
  %s13 = inlined_call_operand.hbm [shape: f32[2,32], index: 13, kind: output, shape index: {1}]
  %s14 = inlined_call_operand.hbm [shape: f32[2,32], index: 14, kind: output, shape index: {2}]
  %15 = xla_tuple %s12, %s13, %s14
  %s16 = sld [smem:[#allocation0]]
  $region94: #{seq2seq_forward.1} parent=0
    _
  %s18 = ssub.s32 1, %s16
  %s19 = scalar_select 0, %s18, %s16
  $region1: #{seq2seq_forward.1} parent=0
    #allocation2 [shape = 'u8[512]{0}', space=smem, size = 0x200, scoped, tag = 'input window, operand 0, single buffered']
    #allocation3 [shape = 's32[1]{0}', space=sflag, size = 0x4, scoped, tag = 'scoped memory for seq2seq_forward.1']
    #allocation4 [shape = 's32[1]{0}', space=sflag, size = 0x4, scoped, tag = 'scoped memory for seq2seq_forward.1']
    #allocation5 [shape = 's32[1]{0}', space=sflag, size = 0x4, scoped, tag = 'scoped memory for seq2seq_forward.1']
    #allocation6 [shape = 'u8[5120]{0}', space=vmem, size = 0x1400, scoped, tag = 'input window, operand 2, single buffered']
    #allocation7 [shape = 'u8[4096]{0}', space=vmem, size = 0x1000, scoped, tag = 'input window, operand 3, single buffered']
    #allocation8 [shape = 's32[1]{0}', space=sflag, size = 0x4, scoped, tag = 'scoped memory for seq2seq_forward.1']
    #allocation9 [shape = 'u8[512]{0}', space=vmem, size = 0x400, scoped, tag = 'input window, operand 9, single buffered']
    #allocation10 [shape = 'u8[512]{0}', space=vmem, size = 0x400, scoped, tag = 'input window, operand 11, single buffered']
    #allocation11 [shape = 's32[1]{0}', space=sflag, size = 0x4, scoped, tag = 'scoped memory for seq2seq_forward.1']
    #allocation12 [shape = 'u8[5120]{0}', space=vmem, size = 0x1400, scoped, tag = 'output window, operand 0, single buffered']
    #allocation13 [shape = 'u8[1024]{0}', space=vmem, size = 0x400, scoped, tag = 'output window, operand 1, single buffered']
    #allocation14 [shape = 's32[1]{0}', space=sflag, size = 0x4, scoped, tag = 'scoped memory for seq2seq_forward.1']
    #allocation15 [shape = 'u8[1024]{0}', space=vmem, size = 0x400, scoped, tag = 'output window, operand 2, single buffered']
    %20 = vsyncpa [#allocation5], 0
    %21 = vsyncpa [#allocation3], 0
    %22 = vsyncpa [#allocation8], 0
    %23 = vsyncpa [#allocation11], 0
    %24 = vsyncpa [#allocation4], 0
    %25 = vsyncpa [#allocation14], 0
    // Predicated region
    $region2: #{seq2seq_forward.1} parent=1 // pred_check
      _
    $region3: #{seq2seq_forward.1} parent=1 // pred_check_branch
      %27 = sbr.rel (0) target = $region5
    $region4: #{seq2seq_forward.1} parent=1 // pred_region
      %29 = vsyncadd [#allocation5], 0
      %s31 = sshll.u32 %s0, 4
      %s32 = int_to_ptr.vmem [resolvable:$true] %s31
      %34 = dma.vmem_to_smem %s32, 16, [#allocation2], [#allocation5]
    $region5: #{seq2seq_forward.1} parent=1 // pred_fallthru
      _
    // Predicated region
    $region6: #{seq2seq_forward.1} parent=1 // pred_check
      _
    $region7: #{seq2seq_forward.1} parent=1 // pred_check_branch
      %36 = sbr.rel (0) target = $region9
    $region8: #{seq2seq_forward.1} parent=1 // pred_region
      _
    $region9: #{seq2seq_forward.1} parent=1 // pred_fallthru
      _
    // Predicated region
    $region10: #{seq2seq_forward.1} parent=1 // pred_check
      _
    $region11: #{seq2seq_forward.1} parent=1 // pred_check_branch
      %38 = sbr.rel (0) target = $region13
    $region12: #{seq2seq_forward.1} parent=1 // pred_region
      %40 = vsyncadd [#allocation3], 0
      %s41 = sshll.u32 %s2, 4
      %s42 = int_to_ptr.hbm [resolvable:$true] %s41
      %s43 = sshll.u32 [#allocation6], 4
      %s44 = int_to_ptr.vmem [resolvable:$true] %s43
      %49 = dma.hbm_to_vmem [thread:$0]  %s42, 160, %s44, [#allocation3], 32, 32, 2
    $region13: #{seq2seq_forward.1} parent=1 // pred_fallthru
      _
    // Predicated region
    $region14: #{seq2seq_forward.1} parent=1 // pred_check
      _
    $region15: #{seq2seq_forward.1} parent=1 // pred_check_branch
      %51 = sbr.rel (0) target = $region17
    $region16: #{seq2seq_forward.1} parent=1 // pred_region
      %53 = vsyncadd [#allocation8], 0
      %s55 = sshll.u32 %s3, 4
      %s56 = int_to_ptr.hbm [resolvable:$true] %s55
      %s57 = sshll.u32 [#allocation7], 4
      %s58 = int_to_ptr.vmem [resolvable:$true] %s57
      %60 = dma.hbm_to_vmem [thread:$0]  %s56, 128, %s58, [#allocation8]
    $region17: #{seq2seq_forward.1} parent=1 // pred_fallthru
      _
    // Predicated region
    $region18: #{seq2seq_forward.1} parent=1 // pred_check
      _
    $region19: #{seq2seq_forward.1} parent=1 // pred_check_branch
      %62 = sbr.rel (0) target = $region21
    $region20: #{seq2seq_forward.1} parent=1 // pred_region
      _
    $region21: #{seq2seq_forward.1} parent=1 // pred_fallthru
      _
    // Predicated region
    $region22: #{seq2seq_forward.1} parent=1 // pred_check
      _
    $region23: #{seq2seq_forward.1} parent=1 // pred_check_branch
      %64 = sbr.rel (0) target = $region25
    $region24: #{seq2seq_forward.1} parent=1 // pred_region
      _
    $region25: #{seq2seq_forward.1} parent=1 // pred_fallthru
      _
    // Predicated region
    $region26: #{seq2seq_forward.1} parent=1 // pred_check
      _
    $region27: #{seq2seq_forward.1} parent=1 // pred_check_branch
      %66 = sbr.rel (0) target = $region29
    $region28: #{seq2seq_forward.1} parent=1 // pred_region
      _
    $region29: #{seq2seq_forward.1} parent=1 // pred_fallthru
      _
    // Predicated region
    $region30: #{seq2seq_forward.1} parent=1 // pred_check
      _
    $region31: #{seq2seq_forward.1} parent=1 // pred_check_branch
      %68 = sbr.rel (0) target = $region33
    $region32: #{seq2seq_forward.1} parent=1 // pred_region
      _
    $region33: #{seq2seq_forward.1} parent=1 // pred_fallthru
      _
    // Predicated region
    $region34: #{seq2seq_forward.1} parent=1 // pred_check
      _
    $region35: #{seq2seq_forward.1} parent=1 // pred_check_branch
      %70 = sbr.rel (0) target = $region37
    $region36: #{seq2seq_forward.1} parent=1 // pred_region
      _
    $region37: #{seq2seq_forward.1} parent=1 // pred_fallthru
      _
    // Predicated region
    $region38: #{seq2seq_forward.1} parent=1 // pred_check
      _
    $region39: #{seq2seq_forward.1} parent=1 // pred_check_branch
      %72 = sbr.rel (0) target = $region41
    $region40: #{seq2seq_forward.1} parent=1 // pred_region
      %74 = vsyncadd [#allocation8], 0
      %s76 = sshll.u32 %s9, 4
      %s77 = int_to_ptr.hbm [resolvable:$true] %s76
      %s78 = sshll.u32 [#allocation9], 4
      %s79 = int_to_ptr.vmem [resolvable:$true] %s78
      %81 = dma.hbm_to_vmem [thread:$0]  %s77, 16, %s79, [#allocation8]
    $region41: #{seq2seq_forward.1} parent=1 // pred_fallthru
      _
    // Predicated region
    $region42: #{seq2seq_forward.1} parent=1 // pred_check
      _
    $region43: #{seq2seq_forward.1} parent=1 // pred_check_branch
      %83 = sbr.rel (0) target = $region45
    $region44: #{seq2seq_forward.1} parent=1 // pred_region
      _
    $region45: #{seq2seq_forward.1} parent=1 // pred_fallthru
      _
    // Predicated region
    $region46: #{seq2seq_forward.1} parent=1 // pred_check
      _
    $region47: #{seq2seq_forward.1} parent=1 // pred_check_branch
      %85 = sbr.rel (0) target = $region49
    $region48: #{seq2seq_forward.1} parent=1 // pred_region
      %87 = vsyncadd [#allocation11], 0
      %s89 = sshll.u32 %s11, 4
      %s90 = int_to_ptr.hbm [resolvable:$true] %s89
      %s91 = sshll.u32 [#allocation10], 4
      %s92 = int_to_ptr.vmem [resolvable:$true] %s91
      %94 = dma.hbm_to_vmem [thread:$0]  %s90, 16, %s92, [#allocation11]
    $region49: #{seq2seq_forward.1} parent=1 // pred_fallthru
      _
    // Predicated region
    $region50: #{seq2seq_forward.1} parent=1 // pred_check
      _
    $region51: #{seq2seq_forward.1} parent=1 // pred_check_branch
      %96 = sbr.rel (0) target = $region53
    $region52: #{seq2seq_forward.1} parent=1 // pred_region
      %98 = dma.done [#allocation5], 16
    $region53: #{seq2seq_forward.1} parent=1 // pred_fallthru
      _
    // Predicated region
    $region54: #{seq2seq_forward.1} parent=1 // pred_check
      _
    $region55: #{seq2seq_forward.1} parent=1 // pred_check_branch
      %100 = sbr.rel (0) target = $region57
    $region56: #{seq2seq_forward.1} parent=1 // pred_region
      %102 = dma.done [#allocation3], 160
    $region57: #{seq2seq_forward.1} parent=1 // pred_fallthru
      _
    // Predicated region
    $region58: #{seq2seq_forward.1} parent=1 // pred_check
      _
    $region59: #{seq2seq_forward.1} parent=1 // pred_check_branch
      %104 = sbr.rel (0) target = $region61
    $region60: #{seq2seq_forward.1} parent=1 // pred_region
      %106 = dma.done [#allocation8], 128
    $region61: #{seq2seq_forward.1} parent=1 // pred_fallthru
      _
    // Predicated region
    $region62: #{seq2seq_forward.1} parent=1 // pred_check
      _
    $region63: #{seq2seq_forward.1} parent=1 // pred_check_branch
      %108 = sbr.rel (0) target = $region65
    $region64: #{seq2seq_forward.1} parent=1 // pred_region
      %110 = dma.done [#allocation8], 16
    $region65: #{seq2seq_forward.1} parent=1 // pred_fallthru
      _
    // Predicated region
    $region66: #{seq2seq_forward.1} parent=1 // pred_check
      _
    $region67: #{seq2seq_forward.1} parent=1 // pred_check_branch
      %112 = sbr.rel (0) target = $region69
    $region68: #{seq2seq_forward.1} parent=1 // pred_region
      %114 = dma.done [#allocation11], 16
    $region69: #{seq2seq_forward.1} parent=1 // pred_fallthru
      _
    %115 = sfence
    %v116 = vld [vmem:[#allocation7] sm:$0xff]
    %v117 = vld [vmem:[%s4] sm:$0xff]
    %v118 = vld [vmem:[%s4 + $0x8] sm:$0xff]
    %v119 = vld [vmem:[%s4 + $0x10] sm:$0xff]
    %v120 = vld [vmem:[%s4 + $0x18] sm:$0xff]
    %v121 = vld [vmem:[%s5] sm:$0x1]
    %v123 = vperm.slane %v121, 0
    %v125 = vld [vmem:[%s1] sm:$0x3]
    %vm126 = vcmask 261120
    %v128 = vsel %vm126, 0.0, 0
    %130 = vmatpush.msra.mxu0 0.0
    %131 = vmatpush.msra.mxu0 0.0
    %132 = vmatpush.msra.mxu0 0.0
    %133 = vmatpush.msra.mxu0 0.0
    %134 = vmatpush.msra.mxu0 0.0
    %135 = vmatpush.msra.mxu0 0.0
    %136 = vmatpush.msra.mxu0 0.0
    %137 = vmatpush.msra.mxu0 0.0
    %138 = vmatpush.msra.mxu0 0.0
    %139 = vmatpush.msra.mxu0 0.0
    %140 = vmatpush.msra.mxu0 0.0
    %141 = vmatpush.msra.mxu0 0.0
    %142 = vmatpush.msra.mxu0 %v120
    %143 = vmatpush.msra.mxu0 %v119
    %144 = vmatpush.msra.mxu0 %v118
    %145 = vmatpush.msra.mxu0 %v117
    %146 = vmatmul.f32.gmra.mxu0 %v128
    %v147 = vpop.f32.mrf.mxu0
    %v148 = vadd.f32 0.0, %v147
    %149 = vdwg.mxu0
    %vm150 = vcmask 64512
    %v152 = vsel %vm150, %v125, 0
    %154 = vmatpush.msra.mxu0 0.0
    %155 = vmatpush.msra.mxu0 0.0
    %156 = vmatpush.msra.mxu0 0.0
    %157 = vmatpush.msra.mxu0 0.0
    %158 = vmatpush.msra.mxu0 0.0
    %159 = vmatpush.msra.mxu0 0.0
    %160 = vmatpush.msra.mxu0 0.0
    %161 = vmatpush.msra.mxu0 0.0
    %162 = vmatpush.msra.mxu0 0.0
    %163 = vmatpush.msra.mxu0 0.0
    %164 = vmatpush.msra.mxu0 0.0
    %165 = vmatpush.msra.mxu0 0.0
    %166 = vmatpush.msra.mxu0 0.0
    %167 = vmatpush.msra.mxu0 0.0
    %168 = vmatpush.msra.mxu0 0.0
    %169 = vmatpush.msra.mxu0 %v116
    %170 = vmatmul.f32.gmra.mxu0 %v152
    %v171 = vpop.f32.mrf.mxu0
    %v172 = vadd.f32 %v148, %v171
    %173 = vdwg.mxu0
    %v174 = vadd.f32 %v172, %v123
    %v175 = vxor.u32 %v174, 2147483648
    %v176 = vmul.f32 %v175, 1.442695
    %v177 = vpow.pop %v176
    %v178 = vadd.f32 %v177, 1.0
    %v179 = vrcp.pop %v178
    %v180 = vmul.f32 %v178, %v179
    %v181 = vsub.f32 1.0, %v180
    %v182 = vmul.f32 %v179, %v181
    %v183 = vadd.f32 %v179, %v182
    %vm184 = vweird.f32 %v178
    %vm185 = vweird.f32 %v179
    %vm186 = vmor %vm184, %vm185
    %v187 = vsel %vm186, %v179, %v183
    %v188 = vand.u32 2147483647, %v178
    %vm189 = vcmp.eq.f32.partialorder %v188, 8.507059e+37
    %v190 = vand.u32 %v178, 2147483648
    %v191 = vor.u32 1.1754944e-38, %v190
    %v192 = vsel %vm189, %v191, %v187
    %v193 = vmul.f32 1.0, %v192
    %v194 = vtanh.pop %v174
    %v195 = vmul.f32 %v193, 0.0
    %197 = vrot.lane.b32.xlu0 %v194, 64
    %v198 = vpop.permute.xlu0 %197
    %v200 = vmul.f32 %v193, %v198
    %202 = vrot.lane.b32.xlu0 %v200, 32
    %v203 = vpop.permute.xlu0 %202
    %v205 = vadd.f32 %v195, %v203
    %v206 = vtanh.pop %v205
    %208 = vrot.lane.b32.xlu0 %v206, 64
    %v209 = vpop.permute.xlu0 %208
    %v211 = vmul.f32 %v193, %v209
    %s212 = scalar_lea.vmem %s1, 2
    %v213 = vld [vmem:[%s212] sm:$0x3]
    %215 = vrot.lane.b32.xlu0 %v211, 32
    %v216 = vpop.permute.xlu0 %215
    %v217 = vsel %vm126, %v216, 0
    %219 = vmatpush.msra.mxu0 0.0
    %220 = vmatpush.msra.mxu0 0.0
    %221 = vmatpush.msra.mxu0 0.0
    %222 = vmatpush.msra.mxu0 0.0
    %223 = vmatpush.msra.mxu0 0.0
    %224 = vmatpush.msra.mxu0 0.0
    %225 = vmatpush.msra.mxu0 0.0
    %226 = vmatpush.msra.mxu0 0.0
    %227 = vmatpush.msra.mxu0 0.0
    %228 = vmatpush.msra.mxu0 0.0
    %229 = vmatpush.msra.mxu0 0.0
    %230 = vmatpush.msra.mxu0 0.0
    %231 = vmatpush.msra.mxu0 %v120
    %232 = vmatpush.msra.mxu0 %v119
    %233 = vmatpush.msra.mxu0 %v118
    %234 = vmatpush.msra.mxu0 %v117
    %235 = vmatmul.f32.gmra.mxu0 %v217
    %v236 = vpop.f32.mrf.mxu0
    %v237 = vadd.f32 0.0, %v236
    %238 = vdwg.mxu0
    %v240 = vsel %vm150, %v213, 0
    %242 = vmatpush.msra.mxu0 0.0
    %243 = vmatpush.msra.mxu0 0.0
    %244 = vmatpush.msra.mxu0 0.0
    %245 = vmatpush.msra.mxu0 0.0
    %246 = vmatpush.msra.mxu0 0.0
    %247 = vmatpush.msra.mxu0 0.0
    %248 = vmatpush.msra.mxu0 0.0
    %249 = vmatpush.msra.mxu0 0.0
    %250 = vmatpush.msra.mxu0 0.0
    %251 = vmatpush.msra.mxu0 0.0
    %252 = vmatpush.msra.mxu0 0.0
    %253 = vmatpush.msra.mxu0 0.0
    %254 = vmatpush.msra.mxu0 0.0
    %255 = vmatpush.msra.mxu0 0.0
    %256 = vmatpush.msra.mxu0 0.0
    %257 = vmatpush.msra.mxu0 %v116
    %258 = vmatmul.f32.gmra.mxu0 %v240
    %v259 = vpop.f32.mrf.mxu0
    %v260 = vadd.f32 %v237, %v259
    %261 = vdwg.mxu0
    %v262 = vadd.f32 %v260, %v123
    %v263 = vxor.u32 %v262, 2147483648
    %v264 = vmul.f32 %v263, 1.442695
    %v265 = vpow.pop %v264
    %v266 = vadd.f32 %v265, 1.0
    %v267 = vrcp.pop %v266
    %v268 = vmul.f32 %v266, %v267
    %v269 = vsub.f32 1.0, %v268
    %v270 = vmul.f32 %v267, %v269
    %v271 = vadd.f32 %v267, %v270
    %vm272 = vweird.f32 %v266
    %vm273 = vweird.f32 %v267
    %vm274 = vmor %vm272, %vm273
    %v275 = vsel %vm274, %v267, %v271
    %v276 = vand.u32 2147483647, %v266
    %vm277 = vcmp.eq.f32.partialorder %v276, 8.507059e+37
    %v278 = vand.u32 %v266, 2147483648
    %v279 = vor.u32 1.1754944e-38, %v278
    %v280 = vsel %vm277, %v279, %v275
    %v281 = vmul.f32 1.0, %v280
    %v282 = vtanh.pop %v262
    %v283 = vmul.f32 %v281, %v205
    %285 = vrot.lane.b32.xlu0 %v282, 64
    %v286 = vpop.permute.xlu0 %285
    %v288 = vmul.f32 %v281, %v286
    %290 = vrot.lane.b32.xlu0 %v288, 32
    %v291 = vpop.permute.xlu0 %290
    %v293 = vadd.f32 %v283, %v291
    %v294 = vtanh.pop %v293
    %296 = vrot.lane.b32.xlu0 %v294, 64
    %v297 = vpop.permute.xlu0 %296
    %v299 = vmul.f32 %v281, %v297
    %s300 = scalar_lea.vmem %s1, 4
    %v301 = vld [vmem:[%s300] sm:$0x3]
    %303 = vrot.lane.b32.xlu0 %v299, 32
    %v304 = vpop.permute.xlu0 %303
    %v305 = vsel %vm126, %v304, 0
    %307 = vmatpush.msra.mxu0 0.0
    %308 = vmatpush.msra.mxu0 0.0
    %309 = vmatpush.msra.mxu0 0.0
    %310 = vmatpush.msra.mxu0 0.0
    %311 = vmatpush.msra.mxu0 0.0
    %312 = vmatpush.msra.mxu0 0.0
    %313 = vmatpush.msra.mxu0 0.0
    %314 = vmatpush.msra.mxu0 0.0
    %315 = vmatpush.msra.mxu0 0.0
    %316 = vmatpush.msra.mxu0 0.0
    %317 = vmatpush.msra.mxu0 0.0
    %318 = vmatpush.msra.mxu0 0.0
    %319 = vmatpush.msra.mxu0 %v120
    %320 = vmatpush.msra.mxu0 %v119
    %321 = vmatpush.msra.mxu0 %v118
    %322 = vmatpush.msra.mxu0 %v117
    %323 = vmatmul.f32.gmra.mxu0 %v305
    %v324 = vpop.f32.mrf.mxu0
    %v325 = vadd.f32 0.0, %v324
    %326 = vdwg.mxu0
    %v328 = vsel %vm150, %v301, 0
    %330 = vmatpush.msra.mxu0 0.0
    %331 = vmatpush.msra.mxu0 0.0
    %332 = vmatpush.msra.mxu0 0.0
    %333 = vmatpush.msra.mxu0 0.0
    %334 = vmatpush.msra.mxu0 0.0
    %335 = vmatpush.msra.mxu0 0.0
    %336 = vmatpush.msra.mxu0 0.0
    %337 = vmatpush.msra.mxu0 0.0
    %338 = vmatpush.msra.mxu0 0.0
    %339 = vmatpush.msra.mxu0 0.0
    %340 = vmatpush.msra.mxu0 0.0
    %341 = vmatpush.msra.mxu0 0.0
    %342 = vmatpush.msra.mxu0 0.0
    %343 = vmatpush.msra.mxu0 0.0
    %344 = vmatpush.msra.mxu0 0.0
    %345 = vmatpush.msra.mxu0 %v116
    %346 = vmatmul.f32.gmra.mxu0 %v328
    %v347 = vpop.f32.mrf.mxu0
    %v348 = vadd.f32 %v325, %v347
    %349 = vdwg.mxu0
    %v350 = vadd.f32 %v348, %v123
    %v351 = vxor.u32 %v350, 2147483648
    %v352 = vmul.f32 %v351, 1.442695
    %v353 = vpow.pop %v352
    %v354 = vadd.f32 %v353, 1.0
    %v355 = vrcp.pop %v354
    %v356 = vmul.f32 %v354, %v355
    %v357 = vsub.f32 1.0, %v356
    %v358 = vmul.f32 %v355, %v357
    %v359 = vadd.f32 %v355, %v358
    %vm360 = vweird.f32 %v354
    %vm361 = vweird.f32 %v355
    %vm362 = vmor %vm360, %vm361
    %v363 = vsel %vm362, %v355, %v359
    %v364 = vand.u32 2147483647, %v354
    %vm365 = vcmp.eq.f32.partialorder %v364, 8.507059e+37
    %v366 = vand.u32 %v354, 2147483648
    %v367 = vor.u32 1.1754944e-38, %v366
    %v368 = vsel %vm365, %v367, %v363
    %v369 = vmul.f32 1.0, %v368
    %v370 = vtanh.pop %v350
    %v371 = vmul.f32 %v369, %v293
    %373 = vrot.lane.b32.xlu0 %v370, 64
    %v374 = vpop.permute.xlu0 %373
    %v376 = vmul.f32 %v369, %v374
    %378 = vrot.lane.b32.xlu0 %v376, 32
    %v379 = vpop.permute.xlu0 %378
    %v381 = vadd.f32 %v371, %v379
    %v382 = vtanh.pop %v381
    %384 = vrot.lane.b32.xlu0 %v382, 64
    %v385 = vpop.permute.xlu0 %384
    %v387 = vmul.f32 %v369, %v385
    %s388 = scalar_lea.vmem %s1, 6
    %v389 = vld [vmem:[%s388] sm:$0x3]
    %391 = vrot.lane.b32.xlu0 %v387, 32
    %v392 = vpop.permute.xlu0 %391
    %v393 = vsel %vm126, %v392, 0
    %395 = vmatpush.msra.mxu0 0.0
    %396 = vmatpush.msra.mxu0 0.0
    %397 = vmatpush.msra.mxu0 0.0
    %398 = vmatpush.msra.mxu0 0.0
    %399 = vmatpush.msra.mxu0 0.0
    %400 = vmatpush.msra.mxu0 0.0
    %401 = vmatpush.msra.mxu0 0.0
    %402 = vmatpush.msra.mxu0 0.0
    %403 = vmatpush.msra.mxu0 0.0
    %404 = vmatpush.msra.mxu0 0.0
    %405 = vmatpush.msra.mxu0 0.0
    %406 = vmatpush.msra.mxu0 0.0
    %407 = vmatpush.msra.mxu0 %v120
    %408 = vmatpush.msra.mxu0 %v119
    %409 = vmatpush.msra.mxu0 %v118
    %410 = vmatpush.msra.mxu0 %v117
    %411 = vmatmul.f32.gmra.mxu0 %v393
    %v412 = vpop.f32.mrf.mxu0
    %v413 = vadd.f32 0.0, %v412
    %414 = vdwg.mxu0
    %v416 = vsel %vm150, %v389, 0
    %418 = vmatpush.msra.mxu0 0.0
    %419 = vmatpush.msra.mxu0 0.0
    %420 = vmatpush.msra.mxu0 0.0
    %421 = vmatpush.msra.mxu0 0.0
    %422 = vmatpush.msra.mxu0 0.0
    %423 = vmatpush.msra.mxu0 0.0
    %424 = vmatpush.msra.mxu0 0.0
    %425 = vmatpush.msra.mxu0 0.0
    %426 = vmatpush.msra.mxu0 0.0
    %427 = vmatpush.msra.mxu0 0.0
    %428 = vmatpush.msra.mxu0 0.0
    %429 = vmatpush.msra.mxu0 0.0
    %430 = vmatpush.msra.mxu0 0.0
    %431 = vmatpush.msra.mxu0 0.0
    %432 = vmatpush.msra.mxu0 0.0
    %433 = vmatpush.msra.mxu0 %v116
    %434 = vmatmul.f32.gmra.mxu0 %v416
    %v435 = vpop.f32.mrf.mxu0
    %v436 = vadd.f32 %v413, %v435
    %437 = vdwg.mxu0
    %v438 = vadd.f32 %v436, %v123
    %v439 = vxor.u32 %v438, 2147483648
    %v440 = vmul.f32 %v439, 1.442695
    %v441 = vpow.pop %v440
    %v442 = vadd.f32 %v441, 1.0
    %v443 = vrcp.pop %v442
    %v444 = vmul.f32 %v442, %v443
    %v445 = vsub.f32 1.0, %v444
    %v446 = vmul.f32 %v443, %v445
    %v447 = vadd.f32 %v443, %v446
    %vm448 = vweird.f32 %v442
    %vm449 = vweird.f32 %v443
    %vm450 = vmor %vm448, %vm449
    %v451 = vsel %vm450, %v443, %v447
    %v452 = vand.u32 2147483647, %v442
    %vm453 = vcmp.eq.f32.partialorder %v452, 8.507059e+37
    %v454 = vand.u32 %v442, 2147483648
    %v455 = vor.u32 1.1754944e-38, %v454
    %v456 = vsel %vm453, %v455, %v451
    %v457 = vmul.f32 1.0, %v456
    %v458 = vtanh.pop %v438
    %v459 = vmul.f32 %v457, %v381
    %461 = vrot.lane.b32.xlu0 %v458, 64
    %v462 = vpop.permute.xlu0 %461
    %v464 = vmul.f32 %v457, %v462
    %466 = vrot.lane.b32.xlu0 %v464, 32
    %v467 = vpop.permute.xlu0 %466
    %v469 = vadd.f32 %v459, %v467
    %v470 = vtanh.pop %v469
    %472 = vrot.lane.b32.xlu0 %v470, 64
    %v473 = vpop.permute.xlu0 %472
    %v475 = vmul.f32 %v457, %v473
    %s476 = scalar_lea.vmem %s1, 8
    %v477 = vld [vmem:[%s476] sm:$0x3]
    %479 = vrot.lane.b32.xlu0 %v475, 32
    %v480 = vpop.permute.xlu0 %479
    %v481 = vsel %vm126, %v480, 0
    %483 = vmatpush.msra.mxu0 0.0
    %484 = vmatpush.msra.mxu0 0.0
    %485 = vmatpush.msra.mxu0 0.0
    %486 = vmatpush.msra.mxu0 0.0
    %487 = vmatpush.msra.mxu0 0.0
    %488 = vmatpush.msra.mxu0 0.0
    %489 = vmatpush.msra.mxu0 0.0
    %490 = vmatpush.msra.mxu0 0.0
    %491 = vmatpush.msra.mxu0 0.0
    %492 = vmatpush.msra.mxu0 0.0
    %493 = vmatpush.msra.mxu0 0.0
    %494 = vmatpush.msra.mxu0 0.0
    %495 = vmatpush.msra.mxu0 %v120
    %496 = vmatpush.msra.mxu0 %v119
    %497 = vmatpush.msra.mxu0 %v118
    %498 = vmatpush.msra.mxu0 %v117
    %499 = vmatmul.f32.gmra.mxu0 %v481
    %v500 = vpop.f32.mrf.mxu0
    %v501 = vadd.f32 0.0, %v500
    %502 = vdwg.mxu0
    %v504 = vsel %vm150, %v477, 0
    %506 = vmatpush.msra.mxu0 0.0
    %507 = vmatpush.msra.mxu0 0.0
    %508 = vmatpush.msra.mxu0 0.0
    %509 = vmatpush.msra.mxu0 0.0
    %510 = vmatpush.msra.mxu0 0.0
    %511 = vmatpush.msra.mxu0 0.0
    %512 = vmatpush.msra.mxu0 0.0
    %513 = vmatpush.msra.mxu0 0.0
    %514 = vmatpush.msra.mxu0 0.0
    %515 = vmatpush.msra.mxu0 0.0
    %516 = vmatpush.msra.mxu0 0.0
    %517 = vmatpush.msra.mxu0 0.0
    %518 = vmatpush.msra.mxu0 0.0
    %519 = vmatpush.msra.mxu0 0.0
    %520 = vmatpush.msra.mxu0 0.0
    %521 = vmatpush.msra.mxu0 %v116
    %522 = vmatmul.f32.gmra.mxu0 %v504
    %v523 = vpop.f32.mrf.mxu0
    %v524 = vadd.f32 %v501, %v523
    %525 = vdwg.mxu0
    %v526 = vadd.f32 %v524, %v123
    %v527 = vxor.u32 %v526, 2147483648
    %v528 = vmul.f32 %v527, 1.442695
    %v529 = vpow.pop %v528
    %v530 = vadd.f32 %v529, 1.0
    %v531 = vrcp.pop %v530
    %v532 = vmul.f32 %v530, %v531
    %v533 = vsub.f32 1.0, %v532
    %v534 = vmul.f32 %v531, %v533
    %v535 = vadd.f32 %v531, %v534
    %vm536 = vweird.f32 %v530
    %vm537 = vweird.f32 %v531
    %vm538 = vmor %vm536, %vm537
    %v539 = vsel %vm538, %v531, %v535
    %v540 = vand.u32 2147483647, %v530
    %vm541 = vcmp.eq.f32.partialorder %v540, 8.507059e+37
    %v542 = vand.u32 %v530, 2147483648
    %v543 = vor.u32 1.1754944e-38, %v542
    %v544 = vsel %vm541, %v543, %v539
    %v545 = vmul.f32 1.0, %v544
    %v546 = vtanh.pop %v526
    %v547 = vmul.f32 %v545, %v469
    %549 = vrot.lane.b32.xlu0 %v546, 64
    %v550 = vpop.permute.xlu0 %549
    %v552 = vmul.f32 %v545, %v550
    %554 = vrot.lane.b32.xlu0 %v552, 32
    %v555 = vpop.permute.xlu0 %554
    %v557 = vadd.f32 %v547, %v555
    %v558 = vtanh.pop %v557
    %560 = vrot.lane.b32.xlu0 %v558, 64
    %v561 = vpop.permute.xlu0 %560
    %v563 = vmul.f32 %v545, %v561
    %s564 = scalar_lea.vmem %s1, 10
    %v565 = vld [vmem:[%s564] sm:$0x3]
    %567 = vrot.lane.b32.xlu0 %v563, 32
    %v568 = vpop.permute.xlu0 %567
    %v569 = vsel %vm126, %v568, 0
    %571 = vmatpush.msra.mxu0 0.0
    %572 = vmatpush.msra.mxu0 0.0
    %573 = vmatpush.msra.mxu0 0.0
    %574 = vmatpush.msra.mxu0 0.0
    %575 = vmatpush.msra.mxu0 0.0
    %576 = vmatpush.msra.mxu0 0.0
    %577 = vmatpush.msra.mxu0 0.0
    %578 = vmatpush.msra.mxu0 0.0
    %579 = vmatpush.msra.mxu0 0.0
    %580 = vmatpush.msra.mxu0 0.0
    %581 = vmatpush.msra.mxu0 0.0
    %582 = vmatpush.msra.mxu0 0.0
    %583 = vmatpush.msra.mxu0 %v120
    %584 = vmatpush.msra.mxu0 %v119
    %585 = vmatpush.msra.mxu0 %v118
    %586 = vmatpush.msra.mxu0 %v117
    %587 = vmatmul.f32.gmra.mxu0 %v569
    %v588 = vpop.f32.mrf.mxu0
    %v589 = vadd.f32 0.0, %v588
    %590 = vdwg.mxu0
    %v592 = vsel %vm150, %v565, 0
    %594 = vmatpush.msra.mxu0 0.0
    %595 = vmatpush.msra.mxu0 0.0
    %596 = vmatpush.msra.mxu0 0.0
    %597 = vmatpush.msra.mxu0 0.0
    %598 = vmatpush.msra.mxu0 0.0
    %599 = vmatpush.msra.mxu0 0.0
    %600 = vmatpush.msra.mxu0 0.0
    %601 = vmatpush.msra.mxu0 0.0
    %602 = vmatpush.msra.mxu0 0.0
    %603 = vmatpush.msra.mxu0 0.0
    %604 = vmatpush.msra.mxu0 0.0
    %605 = vmatpush.msra.mxu0 0.0
    %606 = vmatpush.msra.mxu0 0.0
    %607 = vmatpush.msra.mxu0 0.0
    %608 = vmatpush.msra.mxu0 0.0
    %609 = vmatpush.msra.mxu0 %v116
    %610 = vmatmul.f32.gmra.mxu0 %v592
    %v611 = vpop.f32.mrf.mxu0
    %v612 = vadd.f32 %v589, %v611
    %613 = vdwg.mxu0
    %v614 = vadd.f32 %v612, %v123
    %v615 = vxor.u32 %v614, 2147483648
    %v616 = vmul.f32 %v615, 1.442695
    %v617 = vpow.pop %v616
    %v618 = vadd.f32 %v617, 1.0
    %v619 = vrcp.pop %v618
    %v620 = vmul.f32 %v618, %v619
    %v621 = vsub.f32 1.0, %v620
    %v622 = vmul.f32 %v619, %v621
    %v623 = vadd.f32 %v619, %v622
    %vm624 = vweird.f32 %v618
    %vm625 = vweird.f32 %v619
    %vm626 = vmor %vm624, %vm625
    %v627 = vsel %vm626, %v619, %v623
    %v628 = vand.u32 2147483647, %v618
    %vm629 = vcmp.eq.f32.partialorder %v628, 8.507059e+37
    %v630 = vand.u32 %v618, 2147483648
    %v631 = vor.u32 1.1754944e-38, %v630
    %v632 = vsel %vm629, %v631, %v627
    %v633 = vmul.f32 1.0, %v632
    %v634 = vtanh.pop %v614
    %v635 = vmul.f32 %v633, %v557
    %637 = vrot.lane.b32.xlu0 %v634, 64
    %v638 = vpop.permute.xlu0 %637
    %v640 = vmul.f32 %v633, %v638
    %642 = vrot.lane.b32.xlu0 %v640, 32
    %v643 = vpop.permute.xlu0 %642
    %v645 = vadd.f32 %v635, %v643
    %v646 = vtanh.pop %v645
    %648 = vrot.lane.b32.xlu0 %v646, 64
    %v649 = vpop.permute.xlu0 %648
    %v651 = vmul.f32 %v633, %v649
    %653 = vrot.lane.b32.xlu0 %v651, 32
    %v654 = vpop.permute.xlu0 %653
    %vm656 = vcmask 254976
    %657 = vst.msk [vmem:[#allocation13] sm:$0x3] %vm656, %v654
    %659 = vrot.lane.b32.xlu0 %v645, 96
    %v660 = vpop.permute.xlu0 %659
    %662 = vst.msk [vmem:[#allocation15] sm:$0x3] %vm656, %v660
    %v663 = vld [vmem:[%s6] sm:$0xff]
    %v664 = vld [vmem:[%s7] sm:$0xff]
    %v665 = vld [vmem:[%s7 + $0x8] sm:$0xff]
    %v666 = vld [vmem:[%s7 + $0x10] sm:$0xff]
    %v667 = vld [vmem:[%s7 + $0x18] sm:$0xff]
    %v668 = vld [vmem:[%s8] sm:$0xff]
    %v669 = vld [vmem:[%s8 + $0x8] sm:$0xff]
    %v670 = vld [vmem:[%s8 + $0x10] sm:$0xff]
    %v671 = vld [vmem:[%s8 + $0x18] sm:$0xff]
    %v672 = vld [vmem:[#allocation9] sm:$0x1]
    %v674 = vperm.slane %v672, 0
    %v676 = vsel %vm126, %v654, 0
    %678 = vmatpush.msra.mxu0 0.0
    %679 = vmatpush.msra.mxu0 0.0
    %680 = vmatpush.msra.mxu0 0.0
    %681 = vmatpush.msra.mxu0 0.0
    %682 = vmatpush.msra.mxu0 0.0
    %683 = vmatpush.msra.mxu0 0.0
    %684 = vmatpush.msra.mxu0 0.0
    %685 = vmatpush.msra.mxu0 0.0
    %686 = vmatpush.msra.mxu0 0.0
    %687 = vmatpush.msra.mxu0 0.0
    %688 = vmatpush.msra.mxu0 0.0
    %689 = vmatpush.msra.mxu0 0.0
    %690 = vmatpush.msra.mxu0 %v671
    %691 = vmatpush.msra.mxu0 %v670
    %692 = vmatpush.msra.mxu0 %v669
    %693 = vmatpush.msra.mxu0 %v668
    %694 = vmatmul.f32.gmra.mxu0 %v676
    %v695 = vpop.f32.mrf.mxu0
    %v696 = vadd.f32 %v674, %v695
    %697 = vdwg.mxu0
    %v698 = vld [vmem:[%s10] sm:$0xff]
    %v699 = vld [vmem:[%s10 + $0x8] sm:$0xff]
    %v700 = vld [vmem:[%s10 + $0x10] sm:$0xff]
    %v701 = vld [vmem:[%s10 + $0x18] sm:$0xff]
    %v702 = vld [vmem:[#allocation10] sm:$0x1]
    %v704 = vperm.slane %v702, 0
    %vm706 = vcmask 58368
    %707 = vst.msk [vmem:[#allocation12] sm:$0x3] %vm706, 0.0
    %v708 = vld [vmem:[#allocation6] sm:$0x3]
    %709 = vmatpush.msra.mxu0 0.0
    %710 = vmatpush.msra.mxu0 0.0
    %711 = vmatpush.msra.mxu0 0.0
    %712 = vmatpush.msra.mxu0 0.0
    %713 = vmatpush.msra.mxu0 0.0
    %714 = vmatpush.msra.mxu0 0.0
    %715 = vmatpush.msra.mxu0 0.0
    %716 = vmatpush.msra.mxu0 0.0
    %717 = vmatpush.msra.mxu0 0.0
    %718 = vmatpush.msra.mxu0 0.0
    %719 = vmatpush.msra.mxu0 0.0
    %720 = vmatpush.msra.mxu0 0.0
    %721 = vmatpush.msra.mxu0 %v667
    %722 = vmatpush.msra.mxu0 %v666
    %723 = vmatpush.msra.mxu0 %v665
    %724 = vmatpush.msra.mxu0 %v664
    %725 = vmatmul.f32.gmra.mxu0 %v676
    %v726 = vpop.f32.mrf.mxu0
    %v727 = vadd.f32 0.0, %v726
    %728 = vdwg.mxu0
    %v730 = vsel %vm150, %v708, 0
    %732 = vmatpush.msra.mxu0 0.0
    %733 = vmatpush.msra.mxu0 0.0
    %734 = vmatpush.msra.mxu0 0.0
    %735 = vmatpush.msra.mxu0 0.0
    %736 = vmatpush.msra.mxu0 0.0
    %737 = vmatpush.msra.mxu0 0.0
    %738 = vmatpush.msra.mxu0 0.0
    %739 = vmatpush.msra.mxu0 0.0
    %740 = vmatpush.msra.mxu0 0.0
    %741 = vmatpush.msra.mxu0 0.0
    %742 = vmatpush.msra.mxu0 0.0
    %743 = vmatpush.msra.mxu0 0.0
    %744 = vmatpush.msra.mxu0 0.0
    %745 = vmatpush.msra.mxu0 0.0
    %746 = vmatpush.msra.mxu0 0.0
    %747 = vmatpush.msra.mxu0 %v663
    %748 = vmatmul.f32.gmra.mxu0 %v730
    %v749 = vpop.f32.mrf.mxu0
    %v750 = vadd.f32 %v727, %v749
    %751 = vdwg.mxu0
    %v752 = vadd.f32 %v750, %v696
    %v753 = vxor.u32 %v752, 2147483648
    %v754 = vmul.f32 %v753, 1.442695
    %v755 = vpow.pop %v754
    %v756 = vadd.f32 %v755, 1.0
    %v757 = vrcp.pop %v756
    %v758 = vmul.f32 %v756, %v757
    %v759 = vsub.f32 1.0, %v758
    %v760 = vmul.f32 %v757, %v759
    %v761 = vadd.f32 %v757, %v760
    %vm762 = vweird.f32 %v756
    %vm763 = vweird.f32 %v757
    %vm764 = vmor %vm762, %vm763
    %v765 = vsel %vm764, %v757, %v761
    %v766 = vand.u32 2147483647, %v756
    %vm767 = vcmp.eq.f32.partialorder %v766, 8.507059e+37
    %v768 = vand.u32 %v756, 2147483648
    %v769 = vor.u32 1.1754944e-38, %v768
    %v770 = vsel %vm767, %v769, %v765
    %v771 = vmul.f32 1.0, %v770
    %v772 = vtanh.pop %v752
    %v773 = vmul.f32 %v771, %v645
    %775 = vrot.lane.b32.xlu0 %v772, 64
    %v776 = vpop.permute.xlu0 %775
    %v778 = vmul.f32 %v771, %v776
    %780 = vrot.lane.b32.xlu0 %v778, 32
    %v781 = vpop.permute.xlu0 %780
    %v783 = vadd.f32 %v773, %v781
    %v784 = vtanh.pop %v783
    %786 = vrot.lane.b32.xlu0 %v784, 64
    %v787 = vpop.permute.xlu0 %786
    %v789 = vmul.f32 %v771, %v787
    %791 = vrot.lane.b32.xlu0 %v789, 32
    %v792 = vpop.permute.xlu0 %791
    %v793 = vsel %vm126, %v792, 0
    %795 = vmatpush.msra.mxu0 0.0
    %796 = vmatpush.msra.mxu0 0.0
    %797 = vmatpush.msra.mxu0 0.0
    %798 = vmatpush.msra.mxu0 0.0
    %799 = vmatpush.msra.mxu0 0.0
    %800 = vmatpush.msra.mxu0 0.0
    %801 = vmatpush.msra.mxu0 0.0
    %802 = vmatpush.msra.mxu0 0.0
    %803 = vmatpush.msra.mxu0 0.0
    %804 = vmatpush.msra.mxu0 0.0
    %805 = vmatpush.msra.mxu0 0.0
    %806 = vmatpush.msra.mxu0 0.0
    %807 = vmatpush.msra.mxu0 %v701
    %808 = vmatpush.msra.mxu0 %v700
    %809 = vmatpush.msra.mxu0 %v699
    %810 = vmatpush.msra.mxu0 %v698
    %811 = vmatmul.f32.gmra.mxu0 %v793
    %v812 = vpop.f32.mrf.mxu0
    %v813 = vadd.f32 %v704, %v812
    %814 = vdwg.mxu0
    %s815 = scalar_lea.vmem [#allocation12], 2
    %816 = vst.msk [vmem:[%s815] sm:$0x3] %vm706, %v813
    %s817 = sld [smem:[#allocation2 + $0x1]]
    %p818 = scmp.gt.s32.totalorder %s817, 0
    %s819 = scalar_lea.vmem [#allocation6], 2
    %v820 = vld [vmem:[%s819] sm:$0x3]
    %s821 = scalar_select %p818, 1, 0
    %v822 = vstv %s821
    %vm823 = vcmp.eq.s32.totalorder %v822, 1
    %v824 = vsel %vm823, %v820, %v813
    %825 = vmatpush.msra.mxu0 0.0
    %826 = vmatpush.msra.mxu0 0.0
    %827 = vmatpush.msra.mxu0 0.0
    %828 = vmatpush.msra.mxu0 0.0
    %829 = vmatpush.msra.mxu0 0.0
    %830 = vmatpush.msra.mxu0 0.0
    %831 = vmatpush.msra.mxu0 0.0
    %832 = vmatpush.msra.mxu0 0.0
    %833 = vmatpush.msra.mxu0 0.0
    %834 = vmatpush.msra.mxu0 0.0
    %835 = vmatpush.msra.mxu0 0.0
    %836 = vmatpush.msra.mxu0 0.0
    %837 = vmatpush.msra.mxu0 %v667
    %838 = vmatpush.msra.mxu0 %v666
    %839 = vmatpush.msra.mxu0 %v665
    %840 = vmatpush.msra.mxu0 %v664
    %841 = vmatmul.f32.gmra.mxu0 %v793
    %v842 = vpop.f32.mrf.mxu0
    %v843 = vadd.f32 0.0, %v842
    %844 = vdwg.mxu0
    %v846 = vsel %vm150, %v824, 0
    %848 = vmatpush.msra.mxu0 0.0
    %849 = vmatpush.msra.mxu0 0.0
    %850 = vmatpush.msra.mxu0 0.0
    %851 = vmatpush.msra.mxu0 0.0
    %852 = vmatpush.msra.mxu0 0.0
    %853 = vmatpush.msra.mxu0 0.0
    %854 = vmatpush.msra.mxu0 0.0
    %855 = vmatpush.msra.mxu0 0.0
    %856 = vmatpush.msra.mxu0 0.0
    %857 = vmatpush.msra.mxu0 0.0
    %858 = vmatpush.msra.mxu0 0.0
    %859 = vmatpush.msra.mxu0 0.0
    %860 = vmatpush.msra.mxu0 0.0
    %861 = vmatpush.msra.mxu0 0.0
    %862 = vmatpush.msra.mxu0 0.0
    %863 = vmatpush.msra.mxu0 %v663
    %864 = vmatmul.f32.gmra.mxu0 %v846
    %v865 = vpop.f32.mrf.mxu0
    %v866 = vadd.f32 %v843, %v865
    %867 = vdwg.mxu0
    %v868 = vadd.f32 %v866, %v696
    %v869 = vxor.u32 %v868, 2147483648
    %v870 = vmul.f32 %v869, 1.442695
    %v871 = vpow.pop %v870
    %v872 = vadd.f32 %v871, 1.0
    %v873 = vrcp.pop %v872
    %v874 = vmul.f32 %v872, %v873
    %v875 = vsub.f32 1.0, %v874
    %v876 = vmul.f32 %v873, %v875
    %v877 = vadd.f32 %v873, %v876
    %vm878 = vweird.f32 %v872
    %vm879 = vweird.f32 %v873
    %vm880 = vmor %vm878, %vm879
    %v881 = vsel %vm880, %v873, %v877
    %v882 = vand.u32 2147483647, %v872
    %vm883 = vcmp.eq.f32.partialorder %v882, 8.507059e+37
    %v884 = vand.u32 %v872, 2147483648
    %v885 = vor.u32 1.1754944e-38, %v884
    %v886 = vsel %vm883, %v885, %v881
    %v887 = vmul.f32 1.0, %v886
    %v888 = vtanh.pop %v868
    %v889 = vmul.f32 %v887, %v783
    %891 = vrot.lane.b32.xlu0 %v888, 64
    %v892 = vpop.permute.xlu0 %891
    %v894 = vmul.f32 %v887, %v892
    %896 = vrot.lane.b32.xlu0 %v894, 32
    %v897 = vpop.permute.xlu0 %896
    %v899 = vadd.f32 %v889, %v897
    %v900 = vtanh.pop %v899
    %902 = vrot.lane.b32.xlu0 %v900, 64
    %v903 = vpop.permute.xlu0 %902
    %v905 = vmul.f32 %v887, %v903
    %907 = vrot.lane.b32.xlu0 %v905, 32
    %v908 = vpop.permute.xlu0 %907
    %v909 = vsel %vm126, %v908, 0
    %911 = vmatpush.msra.mxu0 0.0
    %912 = vmatpush.msra.mxu0 0.0
    %913 = vmatpush.msra.mxu0 0.0
    %914 = vmatpush.msra.mxu0 0.0
    %915 = vmatpush.msra.mxu0 0.0
    %916 = vmatpush.msra.mxu0 0.0
    %917 = vmatpush.msra.mxu0 0.0
    %918 = vmatpush.msra.mxu0 0.0
    %919 = vmatpush.msra.mxu0 0.0
    %920 = vmatpush.msra.mxu0 0.0
    %921 = vmatpush.msra.mxu0 0.0
    %922 = vmatpush.msra.mxu0 0.0
    %923 = vmatpush.msra.mxu0 %v701
    %924 = vmatpush.msra.mxu0 %v700
    %925 = vmatpush.msra.mxu0 %v699
    %926 = vmatpush.msra.mxu0 %v698
    %927 = vmatmul.f32.gmra.mxu0 %v909
    %v928 = vpop.f32.mrf.mxu0
    %v929 = vadd.f32 %v704, %v928
    %930 = vdwg.mxu0
    %s931 = scalar_lea.vmem [#allocation12], 4
    %932 = vst.msk [vmem:[%s931] sm:$0x3] %vm706, %v929
    %s933 = sld [smem:[#allocation2 + $0x2]]
    %p934 = scmp.gt.s32.totalorder %s933, 0
    %s935 = scalar_lea.vmem [#allocation6], 4
    %v936 = vld [vmem:[%s935] sm:$0x3]
    %s937 = scalar_select %p934, 1, 0
    %v938 = vstv %s937
    %vm939 = vcmp.eq.s32.totalorder %v938, 1
    %v940 = vsel %vm939, %v936, %v929
    %941 = vmatpush.msra.mxu0 0.0
    %942 = vmatpush.msra.mxu0 0.0
    %943 = vmatpush.msra.mxu0 0.0
    %944 = vmatpush.msra.mxu0 0.0
    %945 = vmatpush.msra.mxu0 0.0
    %946 = vmatpush.msra.mxu0 0.0
    %947 = vmatpush.msra.mxu0 0.0
    %948 = vmatpush.msra.mxu0 0.0
    %949 = vmatpush.msra.mxu0 0.0
    %950 = vmatpush.msra.mxu0 0.0
    %951 = vmatpush.msra.mxu0 0.0
    %952 = vmatpush.msra.mxu0 0.0
    %953 = vmatpush.msra.mxu0 %v667
    %954 = vmatpush.msra.mxu0 %v666
    %955 = vmatpush.msra.mxu0 %v665
    %956 = vmatpush.msra.mxu0 %v664
    %957 = vmatmul.f32.gmra.mxu0 %v909
    %v958 = vpop.f32.mrf.mxu0
    %v959 = vadd.f32 0.0, %v958
    %960 = vdwg.mxu0
    %v962 = vsel %vm150, %v940, 0
    %964 = vmatpush.msra.mxu0 0.0
    %965 = vmatpush.msra.mxu0 0.0
    %966 = vmatpush.msra.mxu0 0.0
    %967 = vmatpush.msra.mxu0 0.0
    %968 = vmatpush.msra.mxu0 0.0
    %969 = vmatpush.msra.mxu0 0.0
    %970 = vmatpush.msra.mxu0 0.0
    %971 = vmatpush.msra.mxu0 0.0
    %972 = vmatpush.msra.mxu0 0.0
    %973 = vmatpush.msra.mxu0 0.0
    %974 = vmatpush.msra.mxu0 0.0
    %975 = vmatpush.msra.mxu0 0.0
    %976 = vmatpush.msra.mxu0 0.0
    %977 = vmatpush.msra.mxu0 0.0
    %978 = vmatpush.msra.mxu0 0.0
    %979 = vmatpush.msra.mxu0 %v663
    %980 = vmatmul.f32.gmra.mxu0 %v962
    %v981 = vpop.f32.mrf.mxu0
    %v982 = vadd.f32 %v959, %v981
    %983 = vdwg.mxu0
    %v984 = vadd.f32 %v982, %v696
    %v985 = vxor.u32 %v984, 2147483648
    %v986 = vmul.f32 %v985, 1.442695
    %v987 = vpow.pop %v986
    %v988 = vadd.f32 %v987, 1.0
    %v989 = vrcp.pop %v988
    %v990 = vmul.f32 %v988, %v989
    %v991 = vsub.f32 1.0, %v990
    %v992 = vmul.f32 %v989, %v991
    %v993 = vadd.f32 %v989, %v992
    %vm994 = vweird.f32 %v988
    %vm995 = vweird.f32 %v989
    %vm996 = vmor %vm994, %vm995
    %v997 = vsel %vm996, %v989, %v993
    %v998 = vand.u32 2147483647, %v988
    %vm999 = vcmp.eq.f32.partialorder %v998, 8.507059e+37
    %v1000 = vand.u32 %v988, 2147483648
    %v1001 = vor.u32 1.1754944e-38, %v1000
    %v1002 = vsel %vm999, %v1001, %v997
    %v1003 = vmul.f32 1.0, %v1002
    %v1004 = vtanh.pop %v984
    %v1005 = vmul.f32 %v1003, %v899
    %1007 = vrot.lane.b32.xlu0 %v1004, 64
    %v1008 = vpop.permute.xlu0 %1007
    %v1010 = vmul.f32 %v1003, %v1008
    %1012 = vrot.lane.b32.xlu0 %v1010, 32
    %v1013 = vpop.permute.xlu0 %1012
    %v1015 = vadd.f32 %v1005, %v1013
    %v1016 = vtanh.pop %v1015
    %1018 = vrot.lane.b32.xlu0 %v1016, 64
    %v1019 = vpop.permute.xlu0 %1018
    %v1021 = vmul.f32 %v1003, %v1019
    %1023 = vrot.lane.b32.xlu0 %v1021, 32
    %v1024 = vpop.permute.xlu0 %1023
    %v1025 = vsel %vm126, %v1024, 0
    %1027 = vmatpush.msra.mxu0 0.0
    %1028 = vmatpush.msra.mxu0 0.0
    %1029 = vmatpush.msra.mxu0 0.0
    %1030 = vmatpush.msra.mxu0 0.0
    %1031 = vmatpush.msra.mxu0 0.0
    %1032 = vmatpush.msra.mxu0 0.0
    %1033 = vmatpush.msra.mxu0 0.0
    %1034 = vmatpush.msra.mxu0 0.0
    %1035 = vmatpush.msra.mxu0 0.0
    %1036 = vmatpush.msra.mxu0 0.0
    %1037 = vmatpush.msra.mxu0 0.0
    %1038 = vmatpush.msra.mxu0 0.0
    %1039 = vmatpush.msra.mxu0 %v701
    %1040 = vmatpush.msra.mxu0 %v700
    %1041 = vmatpush.msra.mxu0 %v699
    %1042 = vmatpush.msra.mxu0 %v698
    %1043 = vmatmul.f32.gmra.mxu0 %v1025
    %v1044 = vpop.f32.mrf.mxu0
    %v1045 = vadd.f32 %v704, %v1044
    %1046 = vdwg.mxu0
    %s1047 = scalar_lea.vmem [#allocation12], 6
    %1048 = vst.msk [vmem:[%s1047] sm:$0x3] %vm706, %v1045
    %s1049 = sld [smem:[#allocation2 + $0x3]]
    %p1050 = scmp.gt.s32.totalorder %s1049, 0
    %s1051 = scalar_lea.vmem [#allocation6], 6
    %v1052 = vld [vmem:[%s1051] sm:$0x3]
    %s1053 = scalar_select %p1050, 1, 0
    %v1054 = vstv %s1053
    %vm1055 = vcmp.eq.s32.totalorder %v1054, 1
    %v1056 = vsel %vm1055, %v1052, %v1045
    %1057 = vmatpush.msra.mxu0 0.0
    %1058 = vmatpush.msra.mxu0 0.0
    %1059 = vmatpush.msra.mxu0 0.0
    %1060 = vmatpush.msra.mxu0 0.0
    %1061 = vmatpush.msra.mxu0 0.0
    %1062 = vmatpush.msra.mxu0 0.0
    %1063 = vmatpush.msra.mxu0 0.0
    %1064 = vmatpush.msra.mxu0 0.0
    %1065 = vmatpush.msra.mxu0 0.0
    %1066 = vmatpush.msra.mxu0 0.0
    %1067 = vmatpush.msra.mxu0 0.0
    %1068 = vmatpush.msra.mxu0 0.0
    %1069 = vmatpush.msra.mxu0 %v667
    %1070 = vmatpush.msra.mxu0 %v666
    %1071 = vmatpush.msra.mxu0 %v665
    %1072 = vmatpush.msra.mxu0 %v664
    %1073 = vmatmul.f32.gmra.mxu0 %v1025
    %v1074 = vpop.f32.mrf.mxu0
    %v1075 = vadd.f32 0.0, %v1074
    %1076 = vdwg.mxu0
    %v1078 = vsel %vm150, %v1056, 0
    %1080 = vmatpush.msra.mxu0 0.0
    %1081 = vmatpush.msra.mxu0 0.0
    %1082 = vmatpush.msra.mxu0 0.0
    %1083 = vmatpush.msra.mxu0 0.0
    %1084 = vmatpush.msra.mxu0 0.0
    %1085 = vmatpush.msra.mxu0 0.0
    %1086 = vmatpush.msra.mxu0 0.0
    %1087 = vmatpush.msra.mxu0 0.0
    %1088 = vmatpush.msra.mxu0 0.0
    %1089 = vmatpush.msra.mxu0 0.0
    %1090 = vmatpush.msra.mxu0 0.0
    %1091 = vmatpush.msra.mxu0 0.0
    %1092 = vmatpush.msra.mxu0 0.0
    %1093 = vmatpush.msra.mxu0 0.0
    %1094 = vmatpush.msra.mxu0 0.0
    %1095 = vmatpush.msra.mxu0 %v663
    %1096 = vmatmul.f32.gmra.mxu0 %v1078
    %v1097 = vpop.f32.mrf.mxu0
    %v1098 = vadd.f32 %v1075, %v1097
    %1099 = vdwg.mxu0
    %v1100 = vadd.f32 %v1098, %v696
    %v1101 = vxor.u32 %v1100, 2147483648
    %v1102 = vmul.f32 %v1101, 1.442695
    %v1103 = vpow.pop %v1102
    %v1104 = vadd.f32 %v1103, 1.0
    %v1105 = vrcp.pop %v1104
    %v1106 = vmul.f32 %v1104, %v1105
    %v1107 = vsub.f32 1.0, %v1106
    %v1108 = vmul.f32 %v1105, %v1107
    %v1109 = vadd.f32 %v1105, %v1108
    %vm1110 = vweird.f32 %v1104
    %vm1111 = vweird.f32 %v1105
    %vm1112 = vmor %vm1110, %vm1111
    %v1113 = vsel %vm1112, %v1105, %v1109
    %v1114 = vand.u32 2147483647, %v1104
    %vm1115 = vcmp.eq.f32.partialorder %v1114, 8.507059e+37
    %v1116 = vand.u32 %v1104, 2147483648
    %v1117 = vor.u32 1.1754944e-38, %v1116
    %v1118 = vsel %vm1115, %v1117, %v1113
    %v1119 = vmul.f32 1.0, %v1118
    %v1120 = vtanh.pop %v1100
    %v1121 = vmul.f32 %v1119, %v1015
    %1123 = vrot.lane.b32.xlu0 %v1120, 64
    %v1124 = vpop.permute.xlu0 %1123
    %v1126 = vmul.f32 %v1119, %v1124
    %1128 = vrot.lane.b32.xlu0 %v1126, 32
    %v1129 = vpop.permute.xlu0 %1128
    %v1131 = vadd.f32 %v1121, %v1129
    %v1132 = vtanh.pop %v1131
    %1134 = vrot.lane.b32.xlu0 %v1132, 64
    %v1135 = vpop.permute.xlu0 %1134
    %v1137 = vmul.f32 %v1119, %v1135
    %1139 = vrot.lane.b32.xlu0 %v1137, 32
    %v1140 = vpop.permute.xlu0 %1139
    %v1141 = vsel %vm126, %v1140, 0
    %1143 = vmatpush.msra.mxu0 0.0
    %1144 = vmatpush.msra.mxu0 0.0
    %1145 = vmatpush.msra.mxu0 0.0
    %1146 = vmatpush.msra.mxu0 0.0
    %1147 = vmatpush.msra.mxu0 0.0
    %1148 = vmatpush.msra.mxu0 0.0
    %1149 = vmatpush.msra.mxu0 0.0
    %1150 = vmatpush.msra.mxu0 0.0
    %1151 = vmatpush.msra.mxu0 0.0
    %1152 = vmatpush.msra.mxu0 0.0
    %1153 = vmatpush.msra.mxu0 0.0
    %1154 = vmatpush.msra.mxu0 0.0
    %1155 = vmatpush.msra.mxu0 %v701
    %1156 = vmatpush.msra.mxu0 %v700
    %1157 = vmatpush.msra.mxu0 %v699
    %1158 = vmatpush.msra.mxu0 %v698
    %1159 = vmatmul.f32.gmra.mxu0 %v1141
    %v1160 = vpop.f32.mrf.mxu0
    %v1161 = vadd.f32 %v704, %v1160
    %1162 = vdwg.mxu0
    %s1163 = scalar_lea.vmem [#allocation12], 8
    %1164 = vst.msk [vmem:[%s1163] sm:$0x3] %vm706, %v1161
    // Predicated region
    $region70: #{seq2seq_forward.1} parent=1 // pred_check
      _
    $region71: #{seq2seq_forward.1} parent=1 // pred_check_branch
      %1166 = sbr.rel (0) target = $region73
    $region72: #{seq2seq_forward.1} parent=1 // pred_region
      %1168 = vsyncadd [#allocation4], 0
      %s1169 = sshll.u32 [#allocation12], 4
      %s1170 = int_to_ptr.vmem [resolvable:$true] %s1169
      %s1171 = sshll.u32 %s12, 4
      %s1172 = int_to_ptr.hbm [resolvable:$true] %s1171
      %1177 = dma.vmem_to_hbm [thread:$0]  %s1170, 160, %s1172, [#allocation4], 32, 32, 2
    $region73: #{seq2seq_forward.1} parent=1 // pred_fallthru
      _
    // Predicated region
    $region74: #{seq2seq_forward.1} parent=1 // pred_check
      _
    $region75: #{seq2seq_forward.1} parent=1 // pred_check_branch
      %1179 = sbr.rel (0) target = $region77
    $region76: #{seq2seq_forward.1} parent=1 // pred_region
      %1181 = vsyncadd [#allocation14], 0
      %s1183 = sshll.u32 [#allocation13], 4
      %s1184 = int_to_ptr.vmem [resolvable:$true] %s1183
      %s1185 = sshll.u32 %s13, 4
      %s1186 = int_to_ptr.hbm [resolvable:$true] %s1185
      %1188 = dma.vmem_to_hbm [thread:$0]  %s1184, 32, %s1186, [#allocation14]
    $region77: #{seq2seq_forward.1} parent=1 // pred_fallthru
      _
    // Predicated region
    $region78: #{seq2seq_forward.1} parent=1 // pred_check
      _
    $region79: #{seq2seq_forward.1} parent=1 // pred_check_branch
      %1190 = sbr.rel (0) target = $region81
    $region80: #{seq2seq_forward.1} parent=1 // pred_region
      %1192 = vsyncadd [#allocation14], 0
      %s1194 = sshll.u32 [#allocation15], 4
      %s1195 = int_to_ptr.vmem [resolvable:$true] %s1194
      %s1196 = sshll.u32 %s14, 4
      %s1197 = int_to_ptr.hbm [resolvable:$true] %s1196
      %1199 = dma.vmem_to_hbm [thread:$0]  %s1195, 32, %s1197, [#allocation14]
    $region81: #{seq2seq_forward.1} parent=1 // pred_fallthru
      _
    // Predicated region
    $region82: #{seq2seq_forward.1} parent=1 // pred_check
      _
    $region83: #{seq2seq_forward.1} parent=1 // pred_check_branch
      %1201 = sbr.rel (0) target = $region85
    $region84: #{seq2seq_forward.1} parent=1 // pred_region
      %1203 = dma.done [#allocation4], 160
    $region85: #{seq2seq_forward.1} parent=1 // pred_fallthru
      _
    // Predicated region
    $region86: #{seq2seq_forward.1} parent=1 // pred_check
      _
    $region87: #{seq2seq_forward.1} parent=1 // pred_check_branch
      %1205 = sbr.rel (0) target = $region89
    $region88: #{seq2seq_forward.1} parent=1 // pred_region
      %1207 = dma.done [#allocation14], 32
    $region89: #{seq2seq_forward.1} parent=1 // pred_fallthru
      _
    // Predicated region
    $region90: #{seq2seq_forward.1} parent=1 // pred_check
      _
    $region91: #{seq2seq_forward.1} parent=1 // pred_check_branch
      %1209 = sbr.rel (0) target = $region93
    $region92: #{seq2seq_forward.1} parent=1 // pred_region
      %1211 = dma.done [#allocation14], 32
    $region93: #{seq2seq_forward.1} parent=1 // pred_fallthru
      _
    %1212 = vsyncpa [#allocation3], 1
    %1213 = vsyncpa [#allocation8], 1
    %1214 = vsyncpa [#allocation11], 1
    %1215 = vsyncpa [#allocation4], 1
    %1216 = vsyncpa [#allocation14], 1
    %1217 = vsyncpa [#allocation5], 1

</llo_original>
